<compile_context>
chip_gen: v5e
topology: v5e:2x2
jax: 0.10.0
libtpu: 0.0.40
codegen_flags: <defaults>
</compile_context>

<pallas_src>
import functools

import jax
import jax.numpy as jnp
from jax import lax
from jax.experimental import pallas as pl
from jax.experimental.pallas import tpu as pltpu


OUT_PAD = 128  # lane-padded width of the fused head output (lane 0 = wdh, lane 1 = rain)


def _round_up(x, m):
    return ((x + m - 1) // m) * m


# -----------------------------------------------------------------------------
# Fused Pallas kernel: wavefronted n_layers GRU over the full sequence + fused heads.
# -----------------------------------------------------------------------------
def two_step_kernel(x_ref, h0_ref, wih_ref, whh_ref, bih_ref, bhh_ref,
                    head_w_ref, head_b_ref,
                    hN_ref, head_ref, *, hidden_size, threshold):
    """All refs f32, VMEM resident, lane/sublane padded.

       x_ref:      [S, B_pad, H_pad]   layer-0 input (In real cols, rest zero)
       h0_ref:     [L, B_pad, H_pad]   initial hidden state per layer
       wih_ref:    [L, H_pad, H_pad]   W_ih^T, gates (r,z,n) packed at col offsets 0,H,2H
       whh_ref:    [L, H_pad, H_pad]   W_hh^T, same gate packing
       bih_ref:    [L, 1, H_pad]       packed input biases
       bhh_ref:    [L, 1, H_pad]       packed hidden biases
       head_w_ref: [H_pad, OUT_PAD]    fused head weight (lane 0 = wet/dry, lane 1 = rain)
       head_b_ref: [1, OUT_PAD]
       hN_ref:     [L, B_pad, H_pad]   final hidden (out); lanes >= H are don't-care
       head_ref:   [S, B_pad, OUT_PAD] fused head output (out); lane 0 = wdh logit,
                                       lane 1 = rain_out, other lanes don't-care
    """
    S, B_pad, H_pad = x_ref.shape
    L = h0_ref.shape[0]
    H = hidden_size

    # ---- per-layer weights / biases loaded once (hoisted out of the wave loop).
    wih = [wih_ref[l] for l in range(L)]
    whh = [whh_ref[l] for l in range(L)]
    bih = [bih_ref[l] for l in range(L)]
    bhh = [bhh_ref[l] for l in range(L)]

    # ---- hoisted layer-0 input projection: one MXU pass for the whole sequence.
    gi0_flat = (jnp.dot(x_ref[...].reshape(S * B_pad, H_pad), wih[0],
                        preferred_element_type=jnp.float32) + bih[0])
    gi0 = [gi0_flat[t * B_pad:(t + 1) * B_pad] for t in range(S)]   # S x [B_pad, H_pad]

    def gru_step(gi_t, h_prev, whh_l, bhh_l):
        # gi_t / gh are gate-packed [B_pad, H_pad]: lanes [0:H)=r, [H:2H)=z, [2H:3H)=n.
        gh = jnp.dot(h_prev, whh_l, preferred_element_type=jnp.float32) + bhh_l
        s = jax.nn.sigmoid(gi_t + gh)                     # r and z in one EUP push
        r_at_n = pltpu.roll(s, shift=2 * H, axis=1)       # r moved onto the n lanes
        n = jnp.tanh(gi_t + r_at_n * gh)                  # n valid at lanes [2H:3H)
        z0 = pltpu.roll(s, shift=H_pad - H, axis=1)       # z moved onto lanes [0:H)
        n0 = pltpu.roll(n, shift=H_pad - 2 * H, axis=1)   # n moved onto lanes [0:H)
        # Lanes >= H carry bounded garbage; every consumer weight has zero rows there.
        return (1.0 - z0) * n0 + z0 * h_prev

    # ---- layer wavefront: wave w runs layer l at time t = w - l. Work within a wave
    #      is independent, so the critical path is S + L - 1 waves, not L * S steps.
    h = [h0_ref[l] for l in range(L)]   # current hidden per layer (vreg-carried)
    prev_out = [None] * L               # newest output of each layer (previous wave)
    feat_list = []                      # last layer's output, time-ordered

    for w in range(S + L - 1):
        new_h = list(h)
        new_out = list(prev_out)
        for l in range(L):
            t = w - l
            if 0 <= t < S:
                if l == 0:
                    gi_t = gi0[t]
                else:
                    gi_t = (jnp.dot(prev_out[l - 1], wih[l],
                                    preferred_element_type=jnp.float32) + bih[l])
                h_new = gru_step(gi_t, h[l], whh[l], bhh[l])
                new_h[l] = h_new
                new_out[l] = h_new
                if l == L - 1:
                    feat_list.append(h_new)
        h = new_h
        prev_out = new_out

    for l in range(L):
        hN_ref[l] = h[l]

    # ---- fused heads: one MXU pass, one lane-dense output slab.
    feats = jnp.concatenate(feat_list, axis=0)            # [S*B_pad, H_pad], time-major
    head = (jnp.dot(feats, head_w_ref[...], preferred_element_type=jnp.float32)
            + head_b_ref[...])                            # lane 0 = wdh, lane 1 = rain
    wet = (jax.nn.sigmoid(head) > threshold).astype(jnp.float32)
    wet_at1 = pltpu.roll(wet, shift=1, axis=1)            # lane 1 := wet gate from lane 0
    lane = lax.broadcasted_iota(jnp.int32, head.shape, 1)
    out = jnp.where(lane == 1, head * wet_at1, head)      # gate only the rain lane
    head_ref[...] = out.reshape(S, B_pad, OUT_PAD)


# -----------------------------------------------------------------------------
# Model wrapper (parameters + padding + pallas_call)
# -----------------------------------------------------------------------------
class TwoStepNetworkGenericPallas:
    """GRU backbone (enable_tn=False, dropout=0), model_type='rnn', fully_size='small'."""
    # TODO(synk): model_type='skip' (feature/identity concat) and fully_size='large'
    #             (3-layer MLP rain head) branches are not implemented in the kernel.

    def __init__(self, n_layers, rnn_input_size, rnn_n_features,
                 metadata_input_size, metadata_n_features, threshold, key):
        self.n_layers = n_layers
        self.H = rnn_n_features
        self.rnn_input_size = rnn_input_size
        self.metadata_input_size = metadata_input_size
        self.metadata_n_features = metadata_n_features
        self.threshold = float(threshold)

        H = rnn_n_features
        H_pad = _round_up(max(H, 1), 128)
        self.H_pad = H_pad
        # Gate packing (r,z,n in one 128-lane slab) needs 3*H to fit the padded width.
        assert 3 * H <= H_pad, "kernel gate-packing assumes 3*hidden <= 128-padded width"
        assert rnn_input_size <= H_pad, "kernel assumes rnn_input_size <= padded hidden"

        # PyTorch-style init U(-k, k), k = 1/sqrt(hidden_size)
        k = 1.0 / jnp.sqrt(jnp.float32(H))
        self.gru_params = []
        for layer in range(n_layers):
            in_size = rnn_input_size if layer == 0 else H
            key, k1, k2, k3, k4 = jax.random.split(key, 5)
            w_ih = jax.random.uniform(k1, (3 * H, in_size), minval=-k, maxval=k, dtype=jnp.float32)
            w_hh = jax.random.uniform(k2, (3 * H, H), minval=-k, maxval=k, dtype=jnp.float32)
            b_ih = jax.random.uniform(k3, (3 * H,), minval=-k, maxval=k, dtype=jnp.float32)
            b_hh = jax.random.uniform(k4, (3 * H,), minval=-k, maxval=k, dtype=jnp.float32)
            self.gru_params.append((w_ih, w_hh, b_ih, b_hh))

        key, k5, k6, k7, k8 = jax.random.split(key, 5)
        kh = 1.0 / jnp.sqrt(jnp.float32(H))
        self.wdh_w = jax.random.uniform(k5, (1, H), minval=-kh, maxval=kh, dtype=jnp.float32)
        self.wdh_b = jax.random.uniform(k6, (1,), minval=-kh, maxval=kh, dtype=jnp.float32)
        self.rh_w = jax.random.uniform(k7, (1, H), minval=-kh, maxval=kh, dtype=jnp.float32)
        self.rh_b = jax.random.uniform(k8, (1,), minval=-kh, maxval=kh, dtype=jnp.float32)

        # ---- gate-packed, pre-transposed kernel-side parameter slabs ----------------
        # Gate g lives at column offset g*H (contiguous r|z|n block), not g*H_pad.
        wih_s, whh_s, bih_s, bhh_s = [], [], [], []
        for (w_ih, w_hh, b_ih, b_hh) in self.gru_params:
            in_size = w_ih.shape[1]
            wih_p = jnp.zeros((H_pad, H_pad), jnp.float32).at[:in_size, :3 * H].set(w_ih.T)
            whh_p = jnp.zeros((H_pad, H_pad), jnp.float32).at[:H, :3 * H].set(w_hh.T)
            bih_p = jnp.zeros((1, H_pad), jnp.float32).at[0, :3 * H].set(b_ih)
            bhh_p = jnp.zeros((1, H_pad), jnp.float32).at[0, :3 * H].set(b_hh)
            wih_s.append(wih_p); whh_s.append(whh_p); bih_s.append(bih_p); bhh_s.append(bhh_p)
        self.wih_pad = jnp.stack(wih_s)   # [L, H_pad, H_pad]
        self.whh_pad = jnp.stack(whh_s)   # [L, H_pad, H_pad]
        self.bih_pad = jnp.stack(bih_s)   # [L, 1, H_pad]
        self.bhh_pad = jnp.stack(bhh_s)   # [L, 1, H_pad]

        # Fused head: wet/dry weight in lane 0, rain weight in lane 1.
        self.head_w_pad = (jnp.zeros((H_pad, OUT_PAD), jnp.float32)
                           .at[:H, 0].set(self.wdh_w[0])
                           .at[:H, 1].set(self.rh_w[0]))
        self.head_b_pad = (jnp.zeros((1, OUT_PAD), jnp.float32)
                           .at[0, 0].set(self.wdh_b[0])
                           .at[0, 1].set(self.rh_b[0]))

    def total_n_features(self):
        return self.H

    def init_state(self, batch_size=1):
        return jnp.zeros((self.n_layers, batch_size, self.H), dtype=jnp.float32)

    def forward(self, data, metadata, state):
        del metadata  # unused by the reference forward (only unpacked)
        B, S, In = data.shape
        H, H_pad, L = self.H, self.H_pad, self.n_layers
        B_pad = _round_up(max(B, 1), 8)

        # Time-major, lane/sublane-padded kernel layout.
        x_tm = jnp.transpose(data, (1, 0, 2)).astype(jnp.float32)                 # [S, B, In]
        x_pad = jnp.zeros((S, B_pad, H_pad), jnp.float32).at[:, :B, :In].set(x_tm)
        h0_pad = jnp.zeros((L, B_pad, H_pad), jnp.float32).at[:, :B, :H].set(
            state.astype(jnp.float32))

        kernel = functools.partial(two_step_kernel, hidden_size=H, threshold=self.threshold)
        hN_pad, head_pad = pl.pallas_call(
            kernel,
            out_shape=(
                jax.ShapeDtypeStruct((L, B_pad, H_pad), jnp.float32),
                jax.ShapeDtypeStruct((S, B_pad, OUT_PAD), jnp.float32),
            ),
            in_specs=[pl.BlockSpec(memory_space=pltpu.MemorySpace.VMEM)] * 8,
            out_specs=(
                pl.BlockSpec(memory_space=pltpu.MemorySpace.VMEM),
                pl.BlockSpec(memory_space=pltpu.MemorySpace.VMEM),
            ),
        )(x_pad, h0_pad, self.wih_pad, self.whh_pad, self.bih_pad, self.bhh_pad,
          self.head_w_pad, self.head_b_pad)

        wdh_out = jnp.transpose(head_pad[:, :B, 0:1], (1, 0, 2))    # [B, S, 1]
        rain_out = jnp.transpose(head_pad[:, :B, 1:2], (1, 0, 2))   # [B, S, 1]
        hidden = hN_pad[:, :B, :H]                                   # [L, B, H]
        return rain_out, wdh_out, hidden


# -----------------------------------------------------------------------------
# Pure-JAX reference (lax.scan GRU + heads) used only for the correctness check.
# -----------------------------------------------------------------------------
def gru_layer_ref(x, h0, w_ih, w_hh, b_ih, b_hh):
    H = h0.shape[-1]

    def cell(h_prev, x_t):
        gi = x_t @ w_ih.T + b_ih
        gh = h_prev @ w_hh.T + b_hh
        r = jax.nn.sigmoid(gi[:, 0:H] + gh[:, 0:H])
        z = jax.nn.sigmoid(gi[:, H:2 * H] + gh[:, H:2 * H])
        n = jnp.tanh(gi[:, 2 * H:3 * H] + r * gh[:, 2 * H:3 * H])
        h_new = (1.0 - z) * n + z * h_prev
        return h_new, h_new

    h_n, ys = lax.scan(cell, h0, jnp.transpose(x, (1, 0, 2)))
    return jnp.transpose(ys, (1, 0, 2)), h_n


def two_step_ref(model, data, metadata, state):
    del metadata
    out = data.astype(jnp.float32)
    states = []
    for layer in range(model.n_layers):
        w_ih, w_hh, b_ih, b_hh = model.gru_params[layer]
        out, h_n = gru_layer_ref(out, state[layer], w_ih, w_hh, b_ih, b_hh)
        states.append(h_n)
    hidden = jnp.stack(states, axis=0)
    wdh = out @ model.wdh_w.T + model.wdh_b                              # [B, S, 1]
    wet = (jax.nn.sigmoid(wdh) > model.threshold).astype(jnp.float32)
    rain = (out @ model.rh_w.T + model.rh_b) * wet
    return rain, wdh, hidden


if __name__ == "__main__":
    key = jax.random.PRNGKey(0)
    key, k_data, k_meta, k_params = jax.random.split(key, 4)

    # Small shapes implied by the forward signature.
    batch = 2
    seq = 8
    rnn_input_size = 16
    rnn_n_features = 32
    metadata_input_size = 8
    metadata_n_features = 16
    n_layers = 2
    threshold = 0.5

    model = TwoStepNetworkGenericPallas(
        n_layers, rnn_input_size, rnn_n_features,
        metadata_input_size, metadata_n_features, threshold, k_params)

    data = jax.random.normal(k_data, (batch, seq, rnn_input_size), dtype=jnp.float32)
    metadata = jax.random.normal(k_meta, (batch, metadata_input_size), dtype=jnp.float32)
    state = model.init_state(batch_size=batch)

    rain_out, wdh_out, hidden = model.forward(data, metadata, state)
    rain_out, wdh_out, hidden = jax.block_until_ready((rain_out, wdh_out, hidden))

    # Verify against the pure-JAX reference.
    ref_rain, ref_wdh, ref_hidden = two_step_ref(model, data, metadata, state)

    assert rain_out.shape == (batch, seq, 1)
    assert wdh_out.shape == (batch, seq, 1)
    assert hidden.shape == (n_layers, batch, rnn_n_features)
    assert jnp.allclose(rain_out, ref_rain, atol=1e-4, rtol=1e-4)
    assert jnp.allclose(wdh_out, ref_wdh, atol=1e-4, rtol=1e-4)
    assert jnp.allclose(hidden, ref_hidden, atol=1e-4, rtol=1e-4)

    print("KERNEL_OK")
</pallas_src>

<mosaic_0001>
module attributes {stable_mosaic.version = 11 : i64} {
  func.func @two_step_kernel(%arg0: memref<8x8x128xf32, #tpu.memory_space<vmem>>, %arg1: memref<2x8x128xf32, #tpu.memory_space<vmem>>, %arg2: memref<2x128x128xf32, #tpu.memory_space<vmem>>, %arg3: memref<2x128x128xf32, #tpu.memory_space<vmem>>, %arg4: memref<2x1x128xf32, #tpu.memory_space<vmem>>, %arg5: memref<2x1x128xf32, #tpu.memory_space<vmem>>, %arg6: memref<128x128xf32, #tpu.memory_space<vmem>>, %arg7: memref<1x128xf32, #tpu.memory_space<vmem>>, %arg8: memref<2x8x128xf32, #tpu.memory_space<vmem>>, %arg9: memref<8x8x128xf32, #tpu.memory_space<vmem>>) attributes {dimension_semantics = [], scalar_prefetch = 0 : i64, scratch_operands = 0 : i64, tpu.core_type = #tpu.core_type<tc>} {
    %c0 = arith.constant 0 : index
    %c0_0 = arith.constant 0 : index
    %c0_1 = arith.constant 0 : index
    %0 = vector.load %arg2[%c0, %c0_0, %c0_1] : memref<2x128x128xf32, #tpu.memory_space<vmem>>, vector<1x128x128xf32>
    %1 = vector.shape_cast %0 : vector<1x128x128xf32> to vector<128x128xf32>
    %c1 = arith.constant 1 : index
    %c0_2 = arith.constant 0 : index
    %c0_3 = arith.constant 0 : index
    %2 = vector.load %arg2[%c1, %c0_2, %c0_3] : memref<2x128x128xf32, #tpu.memory_space<vmem>>, vector<1x128x128xf32>
    %3 = vector.shape_cast %2 : vector<1x128x128xf32> to vector<128x128xf32>
    %c0_4 = arith.constant 0 : index
    %c0_5 = arith.constant 0 : index
    %c0_6 = arith.constant 0 : index
    %4 = vector.load %arg3[%c0_4, %c0_5, %c0_6] : memref<2x128x128xf32, #tpu.memory_space<vmem>>, vector<1x128x128xf32>
    %5 = vector.shape_cast %4 : vector<1x128x128xf32> to vector<128x128xf32>
    %c1_7 = arith.constant 1 : index
    %c0_8 = arith.constant 0 : index
    %c0_9 = arith.constant 0 : index
    %6 = vector.load %arg3[%c1_7, %c0_8, %c0_9] : memref<2x128x128xf32, #tpu.memory_space<vmem>>, vector<1x128x128xf32>
    %7 = vector.shape_cast %6 : vector<1x128x128xf32> to vector<128x128xf32>
    %c0_10 = arith.constant 0 : index
    %c0_11 = arith.constant 0 : index
    %c0_12 = arith.constant 0 : index
    %8 = vector.load %arg4[%c0_10, %c0_11, %c0_12] : memref<2x1x128xf32, #tpu.memory_space<vmem>>, vector<1x1x128xf32>
    %9 = vector.shape_cast %8 : vector<1x1x128xf32> to vector<1x128xf32>
    %c1_13 = arith.constant 1 : index
    %c0_14 = arith.constant 0 : index
    %c0_15 = arith.constant 0 : index
    %10 = vector.load %arg4[%c1_13, %c0_14, %c0_15] : memref<2x1x128xf32, #tpu.memory_space<vmem>>, vector<1x1x128xf32>
    %11 = vector.shape_cast %10 : vector<1x1x128xf32> to vector<1x128xf32>
    %c0_16 = arith.constant 0 : index
    %c0_17 = arith.constant 0 : index
    %c0_18 = arith.constant 0 : index
    %12 = vector.load %arg5[%c0_16, %c0_17, %c0_18] : memref<2x1x128xf32, #tpu.memory_space<vmem>>, vector<1x1x128xf32>
    %13 = vector.shape_cast %12 : vector<1x1x128xf32> to vector<1x128xf32>
    %c1_19 = arith.constant 1 : index
    %c0_20 = arith.constant 0 : index
    %c0_21 = arith.constant 0 : index
    %14 = vector.load %arg5[%c1_19, %c0_20, %c0_21] : memref<2x1x128xf32, #tpu.memory_space<vmem>>, vector<1x1x128xf32>
    %15 = vector.shape_cast %14 : vector<1x1x128xf32> to vector<1x128xf32>
    %c0_22 = arith.constant 0 : index
    %c0_23 = arith.constant 0 : index
    %c0_24 = arith.constant 0 : index
    %16 = vector.load %arg0[%c0_22, %c0_23, %c0_24] : memref<8x8x128xf32, #tpu.memory_space<vmem>>, vector<8x8x128xf32>
    %17 = vector.shape_cast %16 : vector<8x8x128xf32> to vector<64x128xf32>
    %cst = arith.constant dense<0.000000e+00> : vector<64x128xf32>
    %18 = tpu.matmul %17, %1, %cst {dimension_numbers = #tpu.dot_dimension_numbers<[1], [0], [0], [1], [0, 0, 1, 1], [], []>} : vector<64x128xf32>, vector<128x128xf32>, vector<64x128xf32> -> vector<64x128xf32>
    %19 = vector.broadcast %9 : vector<1x128xf32> to vector<64x128xf32>
    %20 = arith.addf %18, %19 : vector<64x128xf32>
    %21 = vector.extract_strided_slice %20 {offsets = [0, 0], sizes = [8, 128], strides = [1, 1]} : vector<64x128xf32> to vector<8x128xf32>
    %22 = vector.extract_strided_slice %20 {offsets = [8, 0], sizes = [8, 128], strides = [1, 1]} : vector<64x128xf32> to vector<8x128xf32>
    %23 = vector.extract_strided_slice %20 {offsets = [16, 0], sizes = [8, 128], strides = [1, 1]} : vector<64x128xf32> to vector<8x128xf32>
    %24 = vector.extract_strided_slice %20 {offsets = [24, 0], sizes = [8, 128], strides = [1, 1]} : vector<64x128xf32> to vector<8x128xf32>
    %25 = vector.extract_strided_slice %20 {offsets = [32, 0], sizes = [8, 128], strides = [1, 1]} : vector<64x128xf32> to vector<8x128xf32>
    %26 = vector.extract_strided_slice %20 {offsets = [40, 0], sizes = [8, 128], strides = [1, 1]} : vector<64x128xf32> to vector<8x128xf32>
    %27 = vector.extract_strided_slice %20 {offsets = [48, 0], sizes = [8, 128], strides = [1, 1]} : vector<64x128xf32> to vector<8x128xf32>
    %28 = vector.extract_strided_slice %20 {offsets = [56, 0], sizes = [8, 128], strides = [1, 1]} : vector<64x128xf32> to vector<8x128xf32>
    %c0_25 = arith.constant 0 : index
    %c0_26 = arith.constant 0 : index
    %c0_27 = arith.constant 0 : index
    %29 = vector.load %arg1[%c0_25, %c0_26, %c0_27] : memref<2x8x128xf32, #tpu.memory_space<vmem>>, vector<1x8x128xf32>
    %30 = vector.shape_cast %29 : vector<1x8x128xf32> to vector<8x128xf32>
    %c1_28 = arith.constant 1 : index
    %c0_29 = arith.constant 0 : index
    %c0_30 = arith.constant 0 : index
    %31 = vector.load %arg1[%c1_28, %c0_29, %c0_30] : memref<2x8x128xf32, #tpu.memory_space<vmem>>, vector<1x8x128xf32>
    %32 = vector.shape_cast %31 : vector<1x8x128xf32> to vector<8x128xf32>
    %cst_31 = arith.constant dense<0.000000e+00> : vector<8x128xf32>
    %33 = tpu.matmul %30, %5, %cst_31 {dimension_numbers = #tpu.dot_dimension_numbers<[1], [0], [0], [1], [0, 0, 1, 1], [], []>} : vector<8x128xf32>, vector<128x128xf32>, vector<8x128xf32> -> vector<8x128xf32>
    %34 = vector.broadcast %13 : vector<1x128xf32> to vector<8x128xf32>
    %35 = arith.addf %33, %34 : vector<8x128xf32>
    %36 = arith.addf %21, %35 : vector<8x128xf32>
    %37 = arith.negf %36 : vector<8x128xf32>
    %38 = math.exp %37 : vector<8x128xf32>
    %cst_32 = arith.constant 1.000000e+00 : f32
    %39 = vector.broadcast %cst_32 : f32 to vector<8x128xf32>
    %40 = arith.addf %39, %38 : vector<8x128xf32>
    %41 = arith.divf %39, %40 : vector<8x128xf32>
    %c64_i32 = arith.constant 64 : i32
    %42 = tpu.dynamic_rotate %41 by %c64_i32 dim 1 : vector<8x128xf32>, i32 -> vector<8x128xf32>
    %43 = arith.mulf %42, %35 : vector<8x128xf32>
    %44 = arith.addf %21, %43 : vector<8x128xf32>
    %45 = math.tanh %44 : vector<8x128xf32>
    %c96_i32 = arith.constant 96 : i32
    %46 = tpu.dynamic_rotate %41 by %c96_i32 dim 1 : vector<8x128xf32>, i32 -> vector<8x128xf32>
    %c64_i32_33 = arith.constant 64 : i32
    %47 = tpu.dynamic_rotate %45 by %c64_i32_33 dim 1 : vector<8x128xf32>, i32 -> vector<8x128xf32>
    %cst_34 = arith.constant 1.000000e+00 : f32
    %48 = vector.broadcast %cst_34 : f32 to vector<8x128xf32>
    %49 = arith.subf %48, %46 : vector<8x128xf32>
    %50 = arith.mulf %49, %47 : vector<8x128xf32>
    %51 = arith.mulf %46, %30 : vector<8x128xf32>
    %52 = arith.addf %50, %51 : vector<8x128xf32>
    %cst_35 = arith.constant dense<0.000000e+00> : vector<8x128xf32>
    %53 = tpu.matmul %52, %5, %cst_35 {dimension_numbers = #tpu.dot_dimension_numbers<[1], [0], [0], [1], [0, 0, 1, 1], [], []>} : vector<8x128xf32>, vector<128x128xf32>, vector<8x128xf32> -> vector<8x128xf32>
    %54 = vector.broadcast %13 : vector<1x128xf32> to vector<8x128xf32>
    %55 = arith.addf %53, %54 : vector<8x128xf32>
    %56 = arith.addf %22, %55 : vector<8x128xf32>
    %57 = arith.negf %56 : vector<8x128xf32>
    %58 = math.exp %57 : vector<8x128xf32>
    %cst_36 = arith.constant 1.000000e+00 : f32
    %59 = vector.broadcast %cst_36 : f32 to vector<8x128xf32>
    %60 = arith.addf %59, %58 : vector<8x128xf32>
    %61 = arith.divf %59, %60 : vector<8x128xf32>
    %c64_i32_37 = arith.constant 64 : i32
    %62 = tpu.dynamic_rotate %61 by %c64_i32_37 dim 1 : vector<8x128xf32>, i32 -> vector<8x128xf32>
    %63 = arith.mulf %62, %55 : vector<8x128xf32>
    %64 = arith.addf %22, %63 : vector<8x128xf32>
    %65 = math.tanh %64 : vector<8x128xf32>
    %c96_i32_38 = arith.constant 96 : i32
    %66 = tpu.dynamic_rotate %61 by %c96_i32_38 dim 1 : vector<8x128xf32>, i32 -> vector<8x128xf32>
    %c64_i32_39 = arith.constant 64 : i32
    %67 = tpu.dynamic_rotate %65 by %c64_i32_39 dim 1 : vector<8x128xf32>, i32 -> vector<8x128xf32>
    %cst_40 = arith.constant 1.000000e+00 : f32
    %68 = vector.broadcast %cst_40 : f32 to vector<8x128xf32>
    %69 = arith.subf %68, %66 : vector<8x128xf32>
    %70 = arith.mulf %69, %67 : vector<8x128xf32>
    %71 = arith.mulf %66, %52 : vector<8x128xf32>
    %72 = arith.addf %70, %71 : vector<8x128xf32>
    %cst_41 = arith.constant dense<0.000000e+00> : vector<8x128xf32>
    %73 = tpu.matmul %52, %3, %cst_41 {dimension_numbers = #tpu.dot_dimension_numbers<[1], [0], [0], [1], [0, 0, 1, 1], [], []>} : vector<8x128xf32>, vector<128x128xf32>, vector<8x128xf32> -> vector<8x128xf32>
    %74 = vector.broadcast %11 : vector<1x128xf32> to vector<8x128xf32>
    %75 = arith.addf %73, %74 : vector<8x128xf32>
    %cst_42 = arith.constant dense<0.000000e+00> : vector<8x128xf32>
    %76 = tpu.matmul %32, %7, %cst_42 {dimension_numbers = #tpu.dot_dimension_numbers<[1], [0], [0], [1], [0, 0, 1, 1], [], []>} : vector<8x128xf32>, vector<128x128xf32>, vector<8x128xf32> -> vector<8x128xf32>
    %77 = vector.broadcast %15 : vector<1x128xf32> to vector<8x128xf32>
    %78 = arith.addf %76, %77 : vector<8x128xf32>
    %79 = arith.addf %75, %78 : vector<8x128xf32>
    %80 = arith.negf %79 : vector<8x128xf32>
    %81 = math.exp %80 : vector<8x128xf32>
    %cst_43 = arith.constant 1.000000e+00 : f32
    %82 = vector.broadcast %cst_43 : f32 to vector<8x128xf32>
    %83 = arith.addf %82, %81 : vector<8x128xf32>
    %84 = arith.divf %82, %83 : vector<8x128xf32>
    %c64_i32_44 = arith.constant 64 : i32
    %85 = tpu.dynamic_rotate %84 by %c64_i32_44 dim 1 : vector<8x128xf32>, i32 -> vector<8x128xf32>
    %86 = arith.mulf %85, %78 : vector<8x128xf32>
    %87 = arith.addf %75, %86 : vector<8x128xf32>
    %88 = math.tanh %87 : vector<8x128xf32>
    %c96_i32_45 = arith.constant 96 : i32
    %89 = tpu.dynamic_rotate %84 by %c96_i32_45 dim 1 : vector<8x128xf32>, i32 -> vector<8x128xf32>
    %c64_i32_46 = arith.constant 64 : i32
    %90 = tpu.dynamic_rotate %88 by %c64_i32_46 dim 1 : vector<8x128xf32>, i32 -> vector<8x128xf32>
    %cst_47 = arith.constant 1.000000e+00 : f32
    %91 = vector.broadcast %cst_47 : f32 to vector<8x128xf32>
    %92 = arith.subf %91, %89 : vector<8x128xf32>
    %93 = arith.mulf %92, %90 : vector<8x128xf32>
    %94 = arith.mulf %89, %32 : vector<8x128xf32>
    %95 = arith.addf %93, %94 : vector<8x128xf32>
    %cst_48 = arith.constant dense<0.000000e+00> : vector<8x128xf32>
    %96 = tpu.matmul %72, %5, %cst_48 {dimension_numbers = #tpu.dot_dimension_numbers<[1], [0], [0], [1], [0, 0, 1, 1], [], []>} : vector<8x128xf32>, vector<128x128xf32>, vector<8x128xf32> -> vector<8x128xf32>
    %97 = vector.broadcast %13 : vector<1x128xf32> to vector<8x128xf32>
    %98 = arith.addf %96, %97 : vector<8x128xf32>
    %99 = arith.addf %23, %98 : vector<8x128xf32>
    %100 = arith.negf %99 : vector<8x128xf32>
    %101 = math.exp %100 : vector<8x128xf32>
    %cst_49 = arith.constant 1.000000e+00 : f32
    %102 = vector.broadcast %cst_49 : f32 to vector<8x128xf32>
    %103 = arith.addf %102, %101 : vector<8x128xf32>
    %104 = arith.divf %102, %103 : vector<8x128xf32>
    %c64_i32_50 = arith.constant 64 : i32
    %105 = tpu.dynamic_rotate %104 by %c64_i32_50 dim 1 : vector<8x128xf32>, i32 -> vector<8x128xf32>
    %106 = arith.mulf %105, %98 : vector<8x128xf32>
    %107 = arith.addf %23, %106 : vector<8x128xf32>
    %108 = math.tanh %107 : vector<8x128xf32>
    %c96_i32_51 = arith.constant 96 : i32
    %109 = tpu.dynamic_rotate %104 by %c96_i32_51 dim 1 : vector<8x128xf32>, i32 -> vector<8x128xf32>
    %c64_i32_52 = arith.constant 64 : i32
    %110 = tpu.dynamic_rotate %108 by %c64_i32_52 dim 1 : vector<8x128xf32>, i32 -> vector<8x128xf32>
    %cst_53 = arith.constant 1.000000e+00 : f32
    %111 = vector.broadcast %cst_53 : f32 to vector<8x128xf32>
    %112 = arith.subf %111, %109 : vector<8x128xf32>
    %113 = arith.mulf %112, %110 : vector<8x128xf32>
    %114 = arith.mulf %109, %72 : vector<8x128xf32>
    %115 = arith.addf %113, %114 : vector<8x128xf32>
    %cst_54 = arith.constant dense<0.000000e+00> : vector<8x128xf32>
    %116 = tpu.matmul %72, %3, %cst_54 {dimension_numbers = #tpu.dot_dimension_numbers<[1], [0], [0], [1], [0, 0, 1, 1], [], []>} : vector<8x128xf32>, vector<128x128xf32>, vector<8x128xf32> -> vector<8x128xf32>
    %117 = vector.broadcast %11 : vector<1x128xf32> to vector<8x128xf32>
    %118 = arith.addf %116, %117 : vector<8x128xf32>
    %cst_55 = arith.constant dense<0.000000e+00> : vector<8x128xf32>
    %119 = tpu.matmul %95, %7, %cst_55 {dimension_numbers = #tpu.dot_dimension_numbers<[1], [0], [0], [1], [0, 0, 1, 1], [], []>} : vector<8x128xf32>, vector<128x128xf32>, vector<8x128xf32> -> vector<8x128xf32>
    %120 = vector.broadcast %15 : vector<1x128xf32> to vector<8x128xf32>
    %121 = arith.addf %119, %120 : vector<8x128xf32>
    %122 = arith.addf %118, %121 : vector<8x128xf32>
    %123 = arith.negf %122 : vector<8x128xf32>
    %124 = math.exp %123 : vector<8x128xf32>
    %cst_56 = arith.constant 1.000000e+00 : f32
    %125 = vector.broadcast %cst_56 : f32 to vector<8x128xf32>
    %126 = arith.addf %125, %124 : vector<8x128xf32>
    %127 = arith.divf %125, %126 : vector<8x128xf32>
    %c64_i32_57 = arith.constant 64 : i32
    %128 = tpu.dynamic_rotate %127 by %c64_i32_57 dim 1 : vector<8x128xf32>, i32 -> vector<8x128xf32>
    %129 = arith.mulf %128, %121 : vector<8x128xf32>
    %130 = arith.addf %118, %129 : vector<8x128xf32>
    %131 = math.tanh %130 : vector<8x128xf32>
    %c96_i32_58 = arith.constant 96 : i32
    %132 = tpu.dynamic_rotate %127 by %c96_i32_58 dim 1 : vector<8x128xf32>, i32 -> vector<8x128xf32>
    %c64_i32_59 = arith.constant 64 : i32
    %133 = tpu.dynamic_rotate %131 by %c64_i32_59 dim 1 : vector<8x128xf32>, i32 -> vector<8x128xf32>
    %cst_60 = arith.constant 1.000000e+00 : f32
    %134 = vector.broadcast %cst_60 : f32 to vector<8x128xf32>
    %135 = arith.subf %134, %132 : vector<8x128xf32>
    %136 = arith.mulf %135, %133 : vector<8x128xf32>
    %137 = arith.mulf %132, %95 : vector<8x128xf32>
    %138 = arith.addf %136, %137 : vector<8x128xf32>
    %cst_61 = arith.constant dense<0.000000e+00> : vector<8x128xf32>
    %139 = tpu.matmul %115, %5, %cst_61 {dimension_numbers = #tpu.dot_dimension_numbers<[1], [0], [0], [1], [0, 0, 1, 1], [], []>} : vector<8x128xf32>, vector<128x128xf32>, vector<8x128xf32> -> vector<8x128xf32>
    %140 = vector.broadcast %13 : vector<1x128xf32> to vector<8x128xf32>
    %141 = arith.addf %139, %140 : vector<8x128xf32>
    %142 = arith.addf %24, %141 : vector<8x128xf32>
    %143 = arith.negf %142 : vector<8x128xf32>
    %144 = math.exp %143 : vector<8x128xf32>
    %cst_62 = arith.constant 1.000000e+00 : f32
    %145 = vector.broadcast %cst_62 : f32 to vector<8x128xf32>
    %146 = arith.addf %145, %144 : vector<8x128xf32>
    %147 = arith.divf %145, %146 : vector<8x128xf32>
    %c64_i32_63 = arith.constant 64 : i32
    %148 = tpu.dynamic_rotate %147 by %c64_i32_63 dim 1 : vector<8x128xf32>, i32 -> vector<8x128xf32>
    %149 = arith.mulf %148, %141 : vector<8x128xf32>
    %150 = arith.addf %24, %149 : vector<8x128xf32>
    %151 = math.tanh %150 : vector<8x128xf32>
    %c96_i32_64 = arith.constant 96 : i32
    %152 = tpu.dynamic_rotate %147 by %c96_i32_64 dim 1 : vector<8x128xf32>, i32 -> vector<8x128xf32>
    %c64_i32_65 = arith.constant 64 : i32
    %153 = tpu.dynamic_rotate %151 by %c64_i32_65 dim 1 : vector<8x128xf32>, i32 -> vector<8x128xf32>
    %cst_66 = arith.constant 1.000000e+00 : f32
    %154 = vector.broadcast %cst_66 : f32 to vector<8x128xf32>
    %155 = arith.subf %154, %152 : vector<8x128xf32>
    %156 = arith.mulf %155, %153 : vector<8x128xf32>
    %157 = arith.mulf %152, %115 : vector<8x128xf32>
    %158 = arith.addf %156, %157 : vector<8x128xf32>
    %cst_67 = arith.constant dense<0.000000e+00> : vector<8x128xf32>
    %159 = tpu.matmul %115, %3, %cst_67 {dimension_numbers = #tpu.dot_dimension_numbers<[1], [0], [0], [1], [0, 0, 1, 1], [], []>} : vector<8x128xf32>, vector<128x128xf32>, vector<8x128xf32> -> vector<8x128xf32>
    %160 = vector.broadcast %11 : vector<1x128xf32> to vector<8x128xf32>
    %161 = arith.addf %159, %160 : vector<8x128xf32>
    %cst_68 = arith.constant dense<0.000000e+00> : vector<8x128xf32>
    %162 = tpu.matmul %138, %7, %cst_68 {dimension_numbers = #tpu.dot_dimension_numbers<[1], [0], [0], [1], [0, 0, 1, 1], [], []>} : vector<8x128xf32>, vector<128x128xf32>, vector<8x128xf32> -> vector<8x128xf32>
    %163 = vector.broadcast %15 : vector<1x128xf32> to vector<8x128xf32>
    %164 = arith.addf %162, %163 : vector<8x128xf32>
    %165 = arith.addf %161, %164 : vector<8x128xf32>
    %166 = arith.negf %165 : vector<8x128xf32>
    %167 = math.exp %166 : vector<8x128xf32>
    %cst_69 = arith.constant 1.000000e+00 : f32
    %168 = vector.broadcast %cst_69 : f32 to vector<8x128xf32>
    %169 = arith.addf %168, %167 : vector<8x128xf32>
    %170 = arith.divf %168, %169 : vector<8x128xf32>
    %c64_i32_70 = arith.constant 64 : i32
    %171 = tpu.dynamic_rotate %170 by %c64_i32_70 dim 1 : vector<8x128xf32>, i32 -> vector<8x128xf32>
    %172 = arith.mulf %171, %164 : vector<8x128xf32>
    %173 = arith.addf %161, %172 : vector<8x128xf32>
    %174 = math.tanh %173 : vector<8x128xf32>
    %c96_i32_71 = arith.constant 96 : i32
    %175 = tpu.dynamic_rotate %170 by %c96_i32_71 dim 1 : vector<8x128xf32>, i32 -> vector<8x128xf32>
    %c64_i32_72 = arith.constant 64 : i32
    %176 = tpu.dynamic_rotate %174 by %c64_i32_72 dim 1 : vector<8x128xf32>, i32 -> vector<8x128xf32>
    %cst_73 = arith.constant 1.000000e+00 : f32
    %177 = vector.broadcast %cst_73 : f32 to vector<8x128xf32>
    %178 = arith.subf %177, %175 : vector<8x128xf32>
    %179 = arith.mulf %178, %176 : vector<8x128xf32>
    %180 = arith.mulf %175, %138 : vector<8x128xf32>
    %181 = arith.addf %179, %180 : vector<8x128xf32>
    %cst_74 = arith.constant dense<0.000000e+00> : vector<8x128xf32>
    %182 = tpu.matmul %158, %5, %cst_74 {dimension_numbers = #tpu.dot_dimension_numbers<[1], [0], [0], [1], [0, 0, 1, 1], [], []>} : vector<8x128xf32>, vector<128x128xf32>, vector<8x128xf32> -> vector<8x128xf32>
    %183 = vector.broadcast %13 : vector<1x128xf32> to vector<8x128xf32>
    %184 = arith.addf %182, %183 : vector<8x128xf32>
    %185 = arith.addf %25, %184 : vector<8x128xf32>
    %186 = arith.negf %185 : vector<8x128xf32>
    %187 = math.exp %186 : vector<8x128xf32>
    %cst_75 = arith.constant 1.000000e+00 : f32
    %188 = vector.broadcast %cst_75 : f32 to vector<8x128xf32>
    %189 = arith.addf %188, %187 : vector<8x128xf32>
    %190 = arith.divf %188, %189 : vector<8x128xf32>
    %c64_i32_76 = arith.constant 64 : i32
    %191 = tpu.dynamic_rotate %190 by %c64_i32_76 dim 1 : vector<8x128xf32>, i32 -> vector<8x128xf32>
    %192 = arith.mulf %191, %184 : vector<8x128xf32>
    %193 = arith.addf %25, %192 : vector<8x128xf32>
    %194 = math.tanh %193 : vector<8x128xf32>
    %c96_i32_77 = arith.constant 96 : i32
    %195 = tpu.dynamic_rotate %190 by %c96_i32_77 dim 1 : vector<8x128xf32>, i32 -> vector<8x128xf32>
    %c64_i32_78 = arith.constant 64 : i32
    %196 = tpu.dynamic_rotate %194 by %c64_i32_78 dim 1 : vector<8x128xf32>, i32 -> vector<8x128xf32>
    %cst_79 = arith.constant 1.000000e+00 : f32
    %197 = vector.broadcast %cst_79 : f32 to vector<8x128xf32>
    %198 = arith.subf %197, %195 : vector<8x128xf32>
    %199 = arith.mulf %198, %196 : vector<8x128xf32>
    %200 = arith.mulf %195, %158 : vector<8x128xf32>
    %201 = arith.addf %199, %200 : vector<8x128xf32>
    %cst_80 = arith.constant dense<0.000000e+00> : vector<8x128xf32>
    %202 = tpu.matmul %158, %3, %cst_80 {dimension_numbers = #tpu.dot_dimension_numbers<[1], [0], [0], [1], [0, 0, 1, 1], [], []>} : vector<8x128xf32>, vector<128x128xf32>, vector<8x128xf32> -> vector<8x128xf32>
    %203 = vector.broadcast %11 : vector<1x128xf32> to vector<8x128xf32>
    %204 = arith.addf %202, %203 : vector<8x128xf32>
    %cst_81 = arith.constant dense<0.000000e+00> : vector<8x128xf32>
    %205 = tpu.matmul %181, %7, %cst_81 {dimension_numbers = #tpu.dot_dimension_numbers<[1], [0], [0], [1], [0, 0, 1, 1], [], []>} : vector<8x128xf32>, vector<128x128xf32>, vector<8x128xf32> -> vector<8x128xf32>
    %206 = vector.broadcast %15 : vector<1x128xf32> to vector<8x128xf32>
    %207 = arith.addf %205, %206 : vector<8x128xf32>
    %208 = arith.addf %204, %207 : vector<8x128xf32>
    %209 = arith.negf %208 : vector<8x128xf32>
    %210 = math.exp %209 : vector<8x128xf32>
    %cst_82 = arith.constant 1.000000e+00 : f32
    %211 = vector.broadcast %cst_82 : f32 to vector<8x128xf32>
    %212 = arith.addf %211, %210 : vector<8x128xf32>
    %213 = arith.divf %211, %212 : vector<8x128xf32>
    %c64_i32_83 = arith.constant 64 : i32
    %214 = tpu.dynamic_rotate %213 by %c64_i32_83 dim 1 : vector<8x128xf32>, i32 -> vector<8x128xf32>
    %215 = arith.mulf %214, %207 : vector<8x128xf32>
    %216 = arith.addf %204, %215 : vector<8x128xf32>
    %217 = math.tanh %216 : vector<8x128xf32>
    %c96_i32_84 = arith.constant 96 : i32
    %218 = tpu.dynamic_rotate %213 by %c96_i32_84 dim 1 : vector<8x128xf32>, i32 -> vector<8x128xf32>
    %c64_i32_85 = arith.constant 64 : i32
    %219 = tpu.dynamic_rotate %217 by %c64_i32_85 dim 1 : vector<8x128xf32>, i32 -> vector<8x128xf32>
    %cst_86 = arith.constant 1.000000e+00 : f32
    %220 = vector.broadcast %cst_86 : f32 to vector<8x128xf32>
    %221 = arith.subf %220, %218 : vector<8x128xf32>
    %222 = arith.mulf %221, %219 : vector<8x128xf32>
    %223 = arith.mulf %218, %181 : vector<8x128xf32>
    %224 = arith.addf %222, %223 : vector<8x128xf32>
    %cst_87 = arith.constant dense<0.000000e+00> : vector<8x128xf32>
    %225 = tpu.matmul %201, %5, %cst_87 {dimension_numbers = #tpu.dot_dimension_numbers<[1], [0], [0], [1], [0, 0, 1, 1], [], []>} : vector<8x128xf32>, vector<128x128xf32>, vector<8x128xf32> -> vector<8x128xf32>
    %226 = vector.broadcast %13 : vector<1x128xf32> to vector<8x128xf32>
    %227 = arith.addf %225, %226 : vector<8x128xf32>
    %228 = arith.addf %26, %227 : vector<8x128xf32>
    %229 = arith.negf %228 : vector<8x128xf32>
    %230 = math.exp %229 : vector<8x128xf32>
    %cst_88 = arith.constant 1.000000e+00 : f32
    %231 = vector.broadcast %cst_88 : f32 to vector<8x128xf32>
    %232 = arith.addf %231, %230 : vector<8x128xf32>
    %233 = arith.divf %231, %232 : vector<8x128xf32>
    %c64_i32_89 = arith.constant 64 : i32
    %234 = tpu.dynamic_rotate %233 by %c64_i32_89 dim 1 : vector<8x128xf32>, i32 -> vector<8x128xf32>
    %235 = arith.mulf %234, %227 : vector<8x128xf32>
    %236 = arith.addf %26, %235 : vector<8x128xf32>
    %237 = math.tanh %236 : vector<8x128xf32>
    %c96_i32_90 = arith.constant 96 : i32
    %238 = tpu.dynamic_rotate %233 by %c96_i32_90 dim 1 : vector<8x128xf32>, i32 -> vector<8x128xf32>
    %c64_i32_91 = arith.constant 64 : i32
    %239 = tpu.dynamic_rotate %237 by %c64_i32_91 dim 1 : vector<8x128xf32>, i32 -> vector<8x128xf32>
    %cst_92 = arith.constant 1.000000e+00 : f32
    %240 = vector.broadcast %cst_92 : f32 to vector<8x128xf32>
    %241 = arith.subf %240, %238 : vector<8x128xf32>
    %242 = arith.mulf %241, %239 : vector<8x128xf32>
    %243 = arith.mulf %238, %201 : vector<8x128xf32>
    %244 = arith.addf %242, %243 : vector<8x128xf32>
    %cst_93 = arith.constant dense<0.000000e+00> : vector<8x128xf32>
    %245 = tpu.matmul %201, %3, %cst_93 {dimension_numbers = #tpu.dot_dimension_numbers<[1], [0], [0], [1], [0, 0, 1, 1], [], []>} : vector<8x128xf32>, vector<128x128xf32>, vector<8x128xf32> -> vector<8x128xf32>
    %246 = vector.broadcast %11 : vector<1x128xf32> to vector<8x128xf32>
    %247 = arith.addf %245, %246 : vector<8x128xf32>
    %cst_94 = arith.constant dense<0.000000e+00> : vector<8x128xf32>
    %248 = tpu.matmul %224, %7, %cst_94 {dimension_numbers = #tpu.dot_dimension_numbers<[1], [0], [0], [1], [0, 0, 1, 1], [], []>} : vector<8x128xf32>, vector<128x128xf32>, vector<8x128xf32> -> vector<8x128xf32>
    %249 = vector.broadcast %15 : vector<1x128xf32> to vector<8x128xf32>
    %250 = arith.addf %248, %249 : vector<8x128xf32>
    %251 = arith.addf %247, %250 : vector<8x128xf32>
    %252 = arith.negf %251 : vector<8x128xf32>
    %253 = math.exp %252 : vector<8x128xf32>
    %cst_95 = arith.constant 1.000000e+00 : f32
    %254 = vector.broadcast %cst_95 : f32 to vector<8x128xf32>
    %255 = arith.addf %254, %253 : vector<8x128xf32>
    %256 = arith.divf %254, %255 : vector<8x128xf32>
    %c64_i32_96 = arith.constant 64 : i32
    %257 = tpu.dynamic_rotate %256 by %c64_i32_96 dim 1 : vector<8x128xf32>, i32 -> vector<8x128xf32>
    %258 = arith.mulf %257, %250 : vector<8x128xf32>
    %259 = arith.addf %247, %258 : vector<8x128xf32>
    %260 = math.tanh %259 : vector<8x128xf32>
    %c96_i32_97 = arith.constant 96 : i32
    %261 = tpu.dynamic_rotate %256 by %c96_i32_97 dim 1 : vector<8x128xf32>, i32 -> vector<8x128xf32>
    %c64_i32_98 = arith.constant 64 : i32
    %262 = tpu.dynamic_rotate %260 by %c64_i32_98 dim 1 : vector<8x128xf32>, i32 -> vector<8x128xf32>
    %cst_99 = arith.constant 1.000000e+00 : f32
    %263 = vector.broadcast %cst_99 : f32 to vector<8x128xf32>
    %264 = arith.subf %263, %261 : vector<8x128xf32>
    %265 = arith.mulf %264, %262 : vector<8x128xf32>
    %266 = arith.mulf %261, %224 : vector<8x128xf32>
    %267 = arith.addf %265, %266 : vector<8x128xf32>
    %cst_100 = arith.constant dense<0.000000e+00> : vector<8x128xf32>
    %268 = tpu.matmul %244, %5, %cst_100 {dimension_numbers = #tpu.dot_dimension_numbers<[1], [0], [0], [1], [0, 0, 1, 1], [], []>} : vector<8x128xf32>, vector<128x128xf32>, vector<8x128xf32> -> vector<8x128xf32>
    %269 = vector.broadcast %13 : vector<1x128xf32> to vector<8x128xf32>
    %270 = arith.addf %268, %269 : vector<8x128xf32>
    %271 = arith.addf %27, %270 : vector<8x128xf32>
    %272 = arith.negf %271 : vector<8x128xf32>
    %273 = math.exp %272 : vector<8x128xf32>
    %cst_101 = arith.constant 1.000000e+00 : f32
    %274 = vector.broadcast %cst_101 : f32 to vector<8x128xf32>
    %275 = arith.addf %274, %273 : vector<8x128xf32>
    %276 = arith.divf %274, %275 : vector<8x128xf32>
    %c64_i32_102 = arith.constant 64 : i32
    %277 = tpu.dynamic_rotate %276 by %c64_i32_102 dim 1 : vector<8x128xf32>, i32 -> vector<8x128xf32>
    %278 = arith.mulf %277, %270 : vector<8x128xf32>
    %279 = arith.addf %27, %278 : vector<8x128xf32>
    %280 = math.tanh %279 : vector<8x128xf32>
    %c96_i32_103 = arith.constant 96 : i32
    %281 = tpu.dynamic_rotate %276 by %c96_i32_103 dim 1 : vector<8x128xf32>, i32 -> vector<8x128xf32>
    %c64_i32_104 = arith.constant 64 : i32
    %282 = tpu.dynamic_rotate %280 by %c64_i32_104 dim 1 : vector<8x128xf32>, i32 -> vector<8x128xf32>
    %cst_105 = arith.constant 1.000000e+00 : f32
    %283 = vector.broadcast %cst_105 : f32 to vector<8x128xf32>
    %284 = arith.subf %283, %281 : vector<8x128xf32>
    %285 = arith.mulf %284, %282 : vector<8x128xf32>
    %286 = arith.mulf %281, %244 : vector<8x128xf32>
    %287 = arith.addf %285, %286 : vector<8x128xf32>
    %cst_106 = arith.constant dense<0.000000e+00> : vector<8x128xf32>
    %288 = tpu.matmul %244, %3, %cst_106 {dimension_numbers = #tpu.dot_dimension_numbers<[1], [0], [0], [1], [0, 0, 1, 1], [], []>} : vector<8x128xf32>, vector<128x128xf32>, vector<8x128xf32> -> vector<8x128xf32>
    %289 = vector.broadcast %11 : vector<1x128xf32> to vector<8x128xf32>
    %290 = arith.addf %288, %289 : vector<8x128xf32>
    %cst_107 = arith.constant dense<0.000000e+00> : vector<8x128xf32>
    %291 = tpu.matmul %267, %7, %cst_107 {dimension_numbers = #tpu.dot_dimension_numbers<[1], [0], [0], [1], [0, 0, 1, 1], [], []>} : vector<8x128xf32>, vector<128x128xf32>, vector<8x128xf32> -> vector<8x128xf32>
    %292 = vector.broadcast %15 : vector<1x128xf32> to vector<8x128xf32>
    %293 = arith.addf %291, %292 : vector<8x128xf32>
    %294 = arith.addf %290, %293 : vector<8x128xf32>
    %295 = arith.negf %294 : vector<8x128xf32>
    %296 = math.exp %295 : vector<8x128xf32>
    %cst_108 = arith.constant 1.000000e+00 : f32
    %297 = vector.broadcast %cst_108 : f32 to vector<8x128xf32>
    %298 = arith.addf %297, %296 : vector<8x128xf32>
    %299 = arith.divf %297, %298 : vector<8x128xf32>
    %c64_i32_109 = arith.constant 64 : i32
    %300 = tpu.dynamic_rotate %299 by %c64_i32_109 dim 1 : vector<8x128xf32>, i32 -> vector<8x128xf32>
    %301 = arith.mulf %300, %293 : vector<8x128xf32>
    %302 = arith.addf %290, %301 : vector<8x128xf32>
    %303 = math.tanh %302 : vector<8x128xf32>
    %c96_i32_110 = arith.constant 96 : i32
    %304 = tpu.dynamic_rotate %299 by %c96_i32_110 dim 1 : vector<8x128xf32>, i32 -> vector<8x128xf32>
    %c64_i32_111 = arith.constant 64 : i32
    %305 = tpu.dynamic_rotate %303 by %c64_i32_111 dim 1 : vector<8x128xf32>, i32 -> vector<8x128xf32>
    %cst_112 = arith.constant 1.000000e+00 : f32
    %306 = vector.broadcast %cst_112 : f32 to vector<8x128xf32>
    %307 = arith.subf %306, %304 : vector<8x128xf32>
    %308 = arith.mulf %307, %305 : vector<8x128xf32>
    %309 = arith.mulf %304, %267 : vector<8x128xf32>
    %310 = arith.addf %308, %309 : vector<8x128xf32>
    %cst_113 = arith.constant dense<0.000000e+00> : vector<8x128xf32>
    %311 = tpu.matmul %287, %5, %cst_113 {dimension_numbers = #tpu.dot_dimension_numbers<[1], [0], [0], [1], [0, 0, 1, 1], [], []>} : vector<8x128xf32>, vector<128x128xf32>, vector<8x128xf32> -> vector<8x128xf32>
    %312 = vector.broadcast %13 : vector<1x128xf32> to vector<8x128xf32>
    %313 = arith.addf %311, %312 : vector<8x128xf32>
    %314 = arith.addf %28, %313 : vector<8x128xf32>
    %315 = arith.negf %314 : vector<8x128xf32>
    %316 = math.exp %315 : vector<8x128xf32>
    %cst_114 = arith.constant 1.000000e+00 : f32
    %317 = vector.broadcast %cst_114 : f32 to vector<8x128xf32>
    %318 = arith.addf %317, %316 : vector<8x128xf32>
    %319 = arith.divf %317, %318 : vector<8x128xf32>
    %c64_i32_115 = arith.constant 64 : i32
    %320 = tpu.dynamic_rotate %319 by %c64_i32_115 dim 1 : vector<8x128xf32>, i32 -> vector<8x128xf32>
    %321 = arith.mulf %320, %313 : vector<8x128xf32>
    %322 = arith.addf %28, %321 : vector<8x128xf32>
    %323 = math.tanh %322 : vector<8x128xf32>
    %c96_i32_116 = arith.constant 96 : i32
    %324 = tpu.dynamic_rotate %319 by %c96_i32_116 dim 1 : vector<8x128xf32>, i32 -> vector<8x128xf32>
    %c64_i32_117 = arith.constant 64 : i32
    %325 = tpu.dynamic_rotate %323 by %c64_i32_117 dim 1 : vector<8x128xf32>, i32 -> vector<8x128xf32>
    %cst_118 = arith.constant 1.000000e+00 : f32
    %326 = vector.broadcast %cst_118 : f32 to vector<8x128xf32>
    %327 = arith.subf %326, %324 : vector<8x128xf32>
    %328 = arith.mulf %327, %325 : vector<8x128xf32>
    %329 = arith.mulf %324, %287 : vector<8x128xf32>
    %330 = arith.addf %328, %329 : vector<8x128xf32>
    %cst_119 = arith.constant dense<0.000000e+00> : vector<8x128xf32>
    %331 = tpu.matmul %287, %3, %cst_119 {dimension_numbers = #tpu.dot_dimension_numbers<[1], [0], [0], [1], [0, 0, 1, 1], [], []>} : vector<8x128xf32>, vector<128x128xf32>, vector<8x128xf32> -> vector<8x128xf32>
    %332 = vector.broadcast %11 : vector<1x128xf32> to vector<8x128xf32>
    %333 = arith.addf %331, %332 : vector<8x128xf32>
    %cst_120 = arith.constant dense<0.000000e+00> : vector<8x128xf32>
    %334 = tpu.matmul %310, %7, %cst_120 {dimension_numbers = #tpu.dot_dimension_numbers<[1], [0], [0], [1], [0, 0, 1, 1], [], []>} : vector<8x128xf32>, vector<128x128xf32>, vector<8x128xf32> -> vector<8x128xf32>
    %335 = vector.broadcast %15 : vector<1x128xf32> to vector<8x128xf32>
    %336 = arith.addf %334, %335 : vector<8x128xf32>
    %337 = arith.addf %333, %336 : vector<8x128xf32>
    %338 = arith.negf %337 : vector<8x128xf32>
    %339 = math.exp %338 : vector<8x128xf32>
    %cst_121 = arith.constant 1.000000e+00 : f32
    %340 = vector.broadcast %cst_121 : f32 to vector<8x128xf32>
    %341 = arith.addf %340, %339 : vector<8x128xf32>
    %342 = arith.divf %340, %341 : vector<8x128xf32>
    %c64_i32_122 = arith.constant 64 : i32
    %343 = tpu.dynamic_rotate %342 by %c64_i32_122 dim 1 : vector<8x128xf32>, i32 -> vector<8x128xf32>
    %344 = arith.mulf %343, %336 : vector<8x128xf32>
    %345 = arith.addf %333, %344 : vector<8x128xf32>
    %346 = math.tanh %345 : vector<8x128xf32>
    %c96_i32_123 = arith.constant 96 : i32
    %347 = tpu.dynamic_rotate %342 by %c96_i32_123 dim 1 : vector<8x128xf32>, i32 -> vector<8x128xf32>
    %c64_i32_124 = arith.constant 64 : i32
    %348 = tpu.dynamic_rotate %346 by %c64_i32_124 dim 1 : vector<8x128xf32>, i32 -> vector<8x128xf32>
    %cst_125 = arith.constant 1.000000e+00 : f32
    %349 = vector.broadcast %cst_125 : f32 to vector<8x128xf32>
    %350 = arith.subf %349, %347 : vector<8x128xf32>
    %351 = arith.mulf %350, %348 : vector<8x128xf32>
    %352 = arith.mulf %347, %310 : vector<8x128xf32>
    %353 = arith.addf %351, %352 : vector<8x128xf32>
    %cst_126 = arith.constant dense<0.000000e+00> : vector<8x128xf32>
    %354 = tpu.matmul %330, %3, %cst_126 {dimension_numbers = #tpu.dot_dimension_numbers<[1], [0], [0], [1], [0, 0, 1, 1], [], []>} : vector<8x128xf32>, vector<128x128xf32>, vector<8x128xf32> -> vector<8x128xf32>
    %355 = vector.broadcast %11 : vector<1x128xf32> to vector<8x128xf32>
    %356 = arith.addf %354, %355 : vector<8x128xf32>
    %cst_127 = arith.constant dense<0.000000e+00> : vector<8x128xf32>
    %357 = tpu.matmul %353, %7, %cst_127 {dimension_numbers = #tpu.dot_dimension_numbers<[1], [0], [0], [1], [0, 0, 1, 1], [], []>} : vector<8x128xf32>, vector<128x128xf32>, vector<8x128xf32> -> vector<8x128xf32>
    %358 = vector.broadcast %15 : vector<1x128xf32> to vector<8x128xf32>
    %359 = arith.addf %357, %358 : vector<8x128xf32>
    %360 = arith.addf %356, %359 : vector<8x128xf32>
    %361 = arith.negf %360 : vector<8x128xf32>
    %362 = math.exp %361 : vector<8x128xf32>
    %cst_128 = arith.constant 1.000000e+00 : f32
    %363 = vector.broadcast %cst_128 : f32 to vector<8x128xf32>
    %364 = arith.addf %363, %362 : vector<8x128xf32>
    %365 = arith.divf %363, %364 : vector<8x128xf32>
    %c64_i32_129 = arith.constant 64 : i32
    %366 = tpu.dynamic_rotate %365 by %c64_i32_129 dim 1 : vector<8x128xf32>, i32 -> vector<8x128xf32>
    %367 = arith.mulf %366, %359 : vector<8x128xf32>
    %368 = arith.addf %356, %367 : vector<8x128xf32>
    %369 = math.tanh %368 : vector<8x128xf32>
    %c96_i32_130 = arith.constant 96 : i32
    %370 = tpu.dynamic_rotate %365 by %c96_i32_130 dim 1 : vector<8x128xf32>, i32 -> vector<8x128xf32>
    %c64_i32_131 = arith.constant 64 : i32
    %371 = tpu.dynamic_rotate %369 by %c64_i32_131 dim 1 : vector<8x128xf32>, i32 -> vector<8x128xf32>
    %cst_132 = arith.constant 1.000000e+00 : f32
    %372 = vector.broadcast %cst_132 : f32 to vector<8x128xf32>
    %373 = arith.subf %372, %370 : vector<8x128xf32>
    %374 = arith.mulf %373, %371 : vector<8x128xf32>
    %375 = arith.mulf %370, %353 : vector<8x128xf32>
    %376 = arith.addf %374, %375 : vector<8x128xf32>
    %c0_133 = arith.constant 0 : index
    %c0_134 = arith.constant 0 : index
    %c0_135 = arith.constant 0 : index
    %377 = vector.load %arg8[%c0_133, %c0_134, %c0_135] : memref<2x8x128xf32, #tpu.memory_space<vmem>>, vector<1x8x128xf32>
    %378 = vector.shape_cast %377 : vector<1x8x128xf32> to vector<8x128xf32>
    %379 = vector.shape_cast %330 : vector<8x128xf32> to vector<1x8x128xf32>
    tpu.vector_store %arg8[%c0_133, %c0_134, %c0_135], %379 {strides = array<i32>} : memref<2x8x128xf32, #tpu.memory_space<vmem>>, vector<1x8x128xf32>,
    %c1_136 = arith.constant 1 : index
    %c0_137 = arith.constant 0 : index
    %c0_138 = arith.constant 0 : index
    %380 = vector.load %arg8[%c1_136, %c0_137, %c0_138] : memref<2x8x128xf32, #tpu.memory_space<vmem>>, vector<1x8x128xf32>
    %381 = vector.shape_cast %380 : vector<1x8x128xf32> to vector<8x128xf32>
    %382 = vector.shape_cast %376 : vector<8x128xf32> to vector<1x8x128xf32>
    tpu.vector_store %arg8[%c1_136, %c0_137, %c0_138], %382 {strides = array<i32>} : memref<2x8x128xf32, #tpu.memory_space<vmem>>, vector<1x8x128xf32>,
    %383 = tpu.concatenate %95, %138, %181, %224, %267, %310, %353, %376 in 0 : vector<8x128xf32>, vector<8x128xf32>, vector<8x128xf32>, vector<8x128xf32>, vector<8x128xf32>, vector<8x128xf32>, vector<8x128xf32>, vector<8x128xf32> -> vector<64x128xf32>
    %c0_139 = arith.constant 0 : index
    %c0_140 = arith.constant 0 : index
    %384 = vector.load %arg6[%c0_139, %c0_140] : memref<128x128xf32, #tpu.memory_space<vmem>>, vector<128x128xf32>
    %cst_141 = arith.constant dense<0.000000e+00> : vector<64x128xf32>
    %385 = tpu.matmul %383, %384, %cst_141 {dimension_numbers = #tpu.dot_dimension_numbers<[1], [0], [0], [1], [0, 0, 1, 1], [], []>} : vector<64x128xf32>, vector<128x128xf32>, vector<64x128xf32> -> vector<64x128xf32>
    %c0_142 = arith.constant 0 : index
    %c0_143 = arith.constant 0 : index
    %386 = vector.load %arg7[%c0_142, %c0_143] : memref<1x128xf32, #tpu.memory_space<vmem>>, vector<1x128xf32>
    %387 = vector.broadcast %386 : vector<1x128xf32> to vector<64x128xf32>
    %388 = arith.addf %385, %387 : vector<64x128xf32>
    %389 = arith.negf %388 : vector<64x128xf32>
    %390 = math.exp %389 : vector<64x128xf32>
    %cst_144 = arith.constant 1.000000e+00 : f32
    %391 = vector.broadcast %cst_144 : f32 to vector<64x128xf32>
    %392 = arith.addf %391, %390 : vector<64x128xf32>
    %393 = arith.divf %391, %392 : vector<64x128xf32>
    %cst_145 = arith.constant 5.000000e-01 : f32
    %394 = vector.broadcast %cst_145 : f32 to vector<64x128xf32>
    %395 = arith.cmpf ogt, %393, %394 : vector<64x128xf32>
    %396 = arith.extui %395 : vector<64x128xi1> to vector<64x128xi32>
    %397 = arith.sitofp %396 : vector<64x128xi32> to vector<64x128xf32>
    %c1_i32 = arith.constant 1 : i32
    %398 = tpu.dynamic_rotate %397 by %c1_i32 dim 1 : vector<64x128xf32>, i32 -> vector<64x128xf32>
    %399 = tpu.iota {dimensions = array<i32: 1>} : vector<64x128xi32>
    %c1_i32_146 = arith.constant 1 : i32
    %400 = vector.broadcast %c1_i32_146 : i32 to vector<64x128xi32>
    %401 = arith.cmpi eq, %399, %400 : vector<64x128xi32>
    %402 = arith.mulf %388, %398 : vector<64x128xf32>
    %403 = arith.select %401, %402, %388 : vector<64x128xi1>, vector<64x128xf32>
    %404 = vector.shape_cast %403 : vector<64x128xf32> to vector<8x8x128xf32>
    %c0_147 = arith.constant 0 : index
    %c0_148 = arith.constant 0 : index
    %c0_149 = arith.constant 0 : index
    %405 = vector.load %arg9[%c0_147, %c0_148, %c0_149] : memref<8x8x128xf32, #tpu.memory_space<vmem>>, vector<8x8x128xf32>
    tpu.vector_store %arg9[%c0_147, %c0_148, %c0_149], %404 {strides = array<i32>} : memref<8x8x128xf32, #tpu.memory_space<vmem>>, vector<8x8x128xf32>,
    return
  }
}

</mosaic_0001>

<llo_original>
// kernel: tpu_custom_call.1
$region0: #{tpu_custom_call.1}
  #allocation0 [shape = 'u32[]', space=smem, size = 0x4, offset = 0x4, fixed_abs, tag = 'smem constant byte address 0x4 - core index']
  #allocation1 [shape = 'u32[72,128]{1,0:T(1,128)}', space=vmem, size = 0x9000, scoped, tag = 'internal scratch']
  %s0 = inlined_call_operand.hbm [shape: f32[8,8,128], index: 0, kind: input, shape index: {}]
  %s1 = inlined_call_operand.hbm [shape: f32[2,8,128], index: 1, kind: input, shape index: {}]
  %s2 = inlined_call_operand.hbm [shape: f32[2,128,128], index: 2, kind: input, shape index: {}]
  %s3 = inlined_call_operand.hbm [shape: f32[2,128,128], index: 3, kind: input, shape index: {}]
  %s4 = inlined_call_operand.vmem [shape: f32[2,1,128], index: 4, kind: input, shape index: {}]
  %s5 = inlined_call_operand.vmem [shape: f32[2,1,128], index: 5, kind: input, shape index: {}]
  %s6 = inlined_call_operand.hbm [shape: f32[128,128], index: 6, kind: input, shape index: {}]
  %s7 = inlined_call_operand.vmem [shape: f32[1,128], index: 7, kind: input, shape index: {}]
  %s8 = inlined_call_operand.hbm [shape: f32[2,8,128], index: 8, kind: output, shape index: {0}]
  %s9 = inlined_call_operand.hbm [shape: f32[8,8,128], index: 9, kind: output, shape index: {1}]
  %10 = xla_tuple %s8, %s9
  %s11 = sld [smem:[#allocation0]]
  $region70: #{tpu_custom_call.1} parent=0
    _
  %s13 = ssub.s32 1, %s11
  %s14 = scalar_select 0, %s13, %s11
  $region1: #{tpu_custom_call.1} parent=0
    #allocation2 [shape = 'u8[32768]{0}', space=vmem, size = 0x8000, scoped, tag = 'input window, operand 0, single buffered']
    #allocation3 [shape = 's32[1]{0}', space=sflag, size = 0x4, scoped, tag = 'scoped memory for tpu_custom_call.1']
    #allocation4 [shape = 's32[1]{0}', space=sflag, size = 0x4, scoped, tag = 'scoped memory for tpu_custom_call.1']
    #allocation5 [shape = 'u8[8192]{0}', space=vmem, size = 0x2000, scoped, tag = 'input window, operand 1, single buffered']
    #allocation6 [shape = 's32[1]{0}', space=sflag, size = 0x4, scoped, tag = 'scoped memory for tpu_custom_call.1']
    #allocation7 [shape = 'u8[131072]{0}', space=vmem, size = 0x20000, scoped, tag = 'input window, operand 2, single buffered']
    #allocation8 [shape = 'u8[131072]{0}', space=vmem, size = 0x20000, scoped, tag = 'input window, operand 3, single buffered']
    #allocation9 [shape = 's32[1]{0}', space=sflag, size = 0x4, scoped, tag = 'scoped memory for tpu_custom_call.1']
    #allocation10 [shape = 'u8[65536]{0}', space=vmem, size = 0x10000, scoped, tag = 'input window, operand 6, single buffered']
    #allocation11 [shape = 'u8[8192]{0}', space=vmem, size = 0x2000, scoped, tag = 'output window, operand 0, single buffered']
    #allocation12 [shape = 'u8[32768]{0}', space=vmem, size = 0x8000, scoped, tag = 'output window, operand 1, single buffered']
    #allocation13 [shape = 's32[1]{0}', space=sflag, size = 0x4, scoped, tag = 'scoped memory for tpu_custom_call.1']
    %15 = vsyncpa [#allocation3], 0
    %16 = vsyncpa [#allocation6], 0
    %17 = vsyncpa [#allocation9], 0
    %18 = vsyncpa [#allocation4], 0
    %19 = vsyncpa [#allocation13], 0
    // Predicated region
    $region2: #{tpu_custom_call.1} parent=1 // pred_check
      _
    $region3: #{tpu_custom_call.1} parent=1 // pred_check_branch
      %21 = sbr.rel (0) target = $region5
    $region4: #{tpu_custom_call.1} parent=1 // pred_region
      %23 = vsyncadd [#allocation3], 0
      %s24 = sshll.u32 %s0, 4
      %s25 = int_to_ptr.hbm [resolvable:$true] %s24
      %s26 = sshll.u32 [#allocation2], 4
      %s27 = int_to_ptr.vmem [resolvable:$true] %s26
      %32 = dma.hbm_to_vmem [thread:$0]  %s25, 1024, %s27, [#allocation3], 128, 128, 8
    $region5: #{tpu_custom_call.1} parent=1 // pred_fallthru
      _
    // Predicated region
    $region6: #{tpu_custom_call.1} parent=1 // pred_check
      _
    $region7: #{tpu_custom_call.1} parent=1 // pred_check_branch
      %34 = sbr.rel (0) target = $region9
    $region8: #{tpu_custom_call.1} parent=1 // pred_region
      %36 = vsyncadd [#allocation6], 0
      %s37 = sshll.u32 %s1, 4
      %s38 = int_to_ptr.hbm [resolvable:$true] %s37
      %s39 = sshll.u32 [#allocation5], 4
      %s40 = int_to_ptr.vmem [resolvable:$true] %s39
      %45 = dma.hbm_to_vmem [thread:$0]  %s38, 256, %s40, [#allocation6], 128, 128, 8
    $region9: #{tpu_custom_call.1} parent=1 // pred_fallthru
      _
    // Predicated region
    $region10: #{tpu_custom_call.1} parent=1 // pred_check
      _
    $region11: #{tpu_custom_call.1} parent=1 // pred_check_branch
      %47 = sbr.rel (0) target = $region13
    $region12: #{tpu_custom_call.1} parent=1 // pred_region
      %49 = vsyncadd [#allocation6], 0
      %s50 = sshll.u32 %s2, 4
      %s51 = int_to_ptr.hbm [resolvable:$true] %s50
      %s52 = sshll.u32 [#allocation7], 4
      %s53 = int_to_ptr.vmem [resolvable:$true] %s52
      %58 = dma.hbm_to_vmem [thread:$0]  %s51, 4096, %s53, [#allocation6], 128, 128, 8
    $region13: #{tpu_custom_call.1} parent=1 // pred_fallthru
      _
    // Predicated region
    $region14: #{tpu_custom_call.1} parent=1 // pred_check
      _
    $region15: #{tpu_custom_call.1} parent=1 // pred_check_branch
      %60 = sbr.rel (0) target = $region17
    $region16: #{tpu_custom_call.1} parent=1 // pred_region
      %62 = vsyncadd [#allocation9], 0
      %s63 = sshll.u32 %s3, 4
      %s64 = int_to_ptr.hbm [resolvable:$true] %s63
      %s65 = sshll.u32 [#allocation8], 4
      %s66 = int_to_ptr.vmem [resolvable:$true] %s65
      %71 = dma.hbm_to_vmem [thread:$0]  %s64, 4096, %s66, [#allocation9], 128, 128, 8
    $region17: #{tpu_custom_call.1} parent=1 // pred_fallthru
      _
    // Predicated region
    $region18: #{tpu_custom_call.1} parent=1 // pred_check
      _
    $region19: #{tpu_custom_call.1} parent=1 // pred_check_branch
      %73 = sbr.rel (0) target = $region21
    $region20: #{tpu_custom_call.1} parent=1 // pred_region
      _
    $region21: #{tpu_custom_call.1} parent=1 // pred_fallthru
      _
    // Predicated region
    $region22: #{tpu_custom_call.1} parent=1 // pred_check
      _
    $region23: #{tpu_custom_call.1} parent=1 // pred_check_branch
      %75 = sbr.rel (0) target = $region25
    $region24: #{tpu_custom_call.1} parent=1 // pred_region
      _
    $region25: #{tpu_custom_call.1} parent=1 // pred_fallthru
      _
    // Predicated region
    $region26: #{tpu_custom_call.1} parent=1 // pred_check
      _
    $region27: #{tpu_custom_call.1} parent=1 // pred_check_branch
      %77 = sbr.rel (0) target = $region29
    $region28: #{tpu_custom_call.1} parent=1 // pred_region
      %79 = vsyncadd [#allocation9], 0
      %s80 = sshll.u32 %s6, 4
      %s81 = int_to_ptr.hbm [resolvable:$true] %s80
      %s82 = sshll.u32 [#allocation10], 4
      %s83 = int_to_ptr.vmem [resolvable:$true] %s82
      %88 = dma.hbm_to_vmem [thread:$0]  %s81, 2048, %s83, [#allocation9], 128, 128, 8
    $region29: #{tpu_custom_call.1} parent=1 // pred_fallthru
      _
    // Predicated region
    $region30: #{tpu_custom_call.1} parent=1 // pred_check
      _
    $region31: #{tpu_custom_call.1} parent=1 // pred_check_branch
      %90 = sbr.rel (0) target = $region33
    $region32: #{tpu_custom_call.1} parent=1 // pred_region
      _
    $region33: #{tpu_custom_call.1} parent=1 // pred_fallthru
      _
    // Predicated region
    $region34: #{tpu_custom_call.1} parent=1 // pred_check
      _
    $region35: #{tpu_custom_call.1} parent=1 // pred_check_branch
      %92 = sbr.rel (0) target = $region37
    $region36: #{tpu_custom_call.1} parent=1 // pred_region
      %94 = dma.done [#allocation3], 1024
    $region37: #{tpu_custom_call.1} parent=1 // pred_fallthru
      _
    // Predicated region
    $region38: #{tpu_custom_call.1} parent=1 // pred_check
      _
    $region39: #{tpu_custom_call.1} parent=1 // pred_check_branch
      %96 = sbr.rel (0) target = $region41
    $region40: #{tpu_custom_call.1} parent=1 // pred_region
      %98 = dma.done [#allocation6], 256
    $region41: #{tpu_custom_call.1} parent=1 // pred_fallthru
      _
    // Predicated region
    $region42: #{tpu_custom_call.1} parent=1 // pred_check
      _
    $region43: #{tpu_custom_call.1} parent=1 // pred_check_branch
      %100 = sbr.rel (0) target = $region45
    $region44: #{tpu_custom_call.1} parent=1 // pred_region
      %102 = dma.done [#allocation6], 4096
    $region45: #{tpu_custom_call.1} parent=1 // pred_fallthru
      _
    // Predicated region
    $region46: #{tpu_custom_call.1} parent=1 // pred_check
      _
    $region47: #{tpu_custom_call.1} parent=1 // pred_check_branch
      %104 = sbr.rel (0) target = $region49
    $region48: #{tpu_custom_call.1} parent=1 // pred_region
      %106 = dma.done [#allocation9], 4096
    $region49: #{tpu_custom_call.1} parent=1 // pred_fallthru
      _
    // Predicated region
    $region50: #{tpu_custom_call.1} parent=1 // pred_check
      _
    $region51: #{tpu_custom_call.1} parent=1 // pred_check_branch
      %108 = sbr.rel (0) target = $region53
    $region52: #{tpu_custom_call.1} parent=1 // pred_region
      %110 = dma.done [#allocation9], 2048
    $region53: #{tpu_custom_call.1} parent=1 // pred_fallthru
      _
    %v111 = vld [vmem:[#allocation7] sm:$0xff]
    %v112 = vld [vmem:[#allocation7 + $0x8] sm:$0xff]
    %v113 = vld [vmem:[#allocation7 + $0x10] sm:$0xff]
    %v114 = vld [vmem:[#allocation7 + $0x18] sm:$0xff]
    %v115 = vld [vmem:[#allocation7 + $0x20] sm:$0xff]
    %v116 = vld [vmem:[#allocation7 + $0x28] sm:$0xff]
    %v117 = vld [vmem:[#allocation7 + $0x30] sm:$0xff]
    %v118 = vld [vmem:[#allocation7 + $0x38] sm:$0xff]
    %v119 = vld [vmem:[#allocation7 + $0x40] sm:$0xff]
    %v120 = vld [vmem:[#allocation7 + $0x48] sm:$0xff]
    %v121 = vld [vmem:[#allocation7 + $0x50] sm:$0xff]
    %v122 = vld [vmem:[#allocation7 + $0x58] sm:$0xff]
    %v123 = vld [vmem:[#allocation7 + $0x60] sm:$0xff]
    %v124 = vld [vmem:[#allocation7 + $0x68] sm:$0xff]
    %v125 = vld [vmem:[#allocation7 + $0x70] sm:$0xff]
    %v126 = vld [vmem:[#allocation7 + $0x78] sm:$0xff]
    %s127 = scalar_lea.vmem [#allocation7], 128
    %v128 = vld [vmem:[%s127] sm:$0xff]
    %v129 = vld [vmem:[%s127 + $0x8] sm:$0xff]
    %v130 = vld [vmem:[%s127 + $0x10] sm:$0xff]
    %v131 = vld [vmem:[%s127 + $0x18] sm:$0xff]
    %v132 = vld [vmem:[%s127 + $0x20] sm:$0xff]
    %v133 = vld [vmem:[%s127 + $0x28] sm:$0xff]
    %v134 = vld [vmem:[%s127 + $0x30] sm:$0xff]
    %v135 = vld [vmem:[%s127 + $0x38] sm:$0xff]
    %v136 = vld [vmem:[%s127 + $0x40] sm:$0xff]
    %v137 = vld [vmem:[%s127 + $0x48] sm:$0xff]
    %v138 = vld [vmem:[%s127 + $0x50] sm:$0xff]
    %v139 = vld [vmem:[%s127 + $0x58] sm:$0xff]
    %v140 = vld [vmem:[%s127 + $0x60] sm:$0xff]
    %v141 = vld [vmem:[%s127 + $0x68] sm:$0xff]
    %v142 = vld [vmem:[%s127 + $0x70] sm:$0xff]
    %v143 = vld [vmem:[%s127 + $0x78] sm:$0xff]
    %v144 = vld [vmem:[#allocation8] sm:$0xff]
    %v145 = vld [vmem:[#allocation8 + $0x8] sm:$0xff]
    %v146 = vld [vmem:[#allocation8 + $0x10] sm:$0xff]
    %v147 = vld [vmem:[#allocation8 + $0x18] sm:$0xff]
    %v148 = vld [vmem:[#allocation8 + $0x20] sm:$0xff]
    %v149 = vld [vmem:[#allocation8 + $0x28] sm:$0xff]
    %v150 = vld [vmem:[#allocation8 + $0x30] sm:$0xff]
    %v151 = vld [vmem:[#allocation8 + $0x38] sm:$0xff]
    %v152 = vld [vmem:[#allocation8 + $0x40] sm:$0xff]
    %v153 = vld [vmem:[#allocation8 + $0x48] sm:$0xff]
    %v154 = vld [vmem:[#allocation8 + $0x50] sm:$0xff]
    %v155 = vld [vmem:[#allocation8 + $0x58] sm:$0xff]
    %v156 = vld [vmem:[#allocation8 + $0x60] sm:$0xff]
    %v157 = vld [vmem:[#allocation8 + $0x68] sm:$0xff]
    %v158 = vld [vmem:[#allocation8 + $0x70] sm:$0xff]
    %v159 = vld [vmem:[#allocation8 + $0x78] sm:$0xff]
    %s160 = scalar_lea.vmem [#allocation8], 128
    %v161 = vld [vmem:[%s160] sm:$0xff]
    %v162 = vld [vmem:[%s160 + $0x8] sm:$0xff]
    %v163 = vld [vmem:[%s160 + $0x10] sm:$0xff]
    %v164 = vld [vmem:[%s160 + $0x18] sm:$0xff]
    %v165 = vld [vmem:[%s160 + $0x20] sm:$0xff]
    %v166 = vld [vmem:[%s160 + $0x28] sm:$0xff]
    %v167 = vld [vmem:[%s160 + $0x30] sm:$0xff]
    %v168 = vld [vmem:[%s160 + $0x38] sm:$0xff]
    %v169 = vld [vmem:[%s160 + $0x40] sm:$0xff]
    %v170 = vld [vmem:[%s160 + $0x48] sm:$0xff]
    %v171 = vld [vmem:[%s160 + $0x50] sm:$0xff]
    %v172 = vld [vmem:[%s160 + $0x58] sm:$0xff]
    %v173 = vld [vmem:[%s160 + $0x60] sm:$0xff]
    %v174 = vld [vmem:[%s160 + $0x68] sm:$0xff]
    %v175 = vld [vmem:[%s160 + $0x70] sm:$0xff]
    %v176 = vld [vmem:[%s160 + $0x78] sm:$0xff]
    %v177 = vld [vmem:[%s4] sm:$0x1]
    %s178 = scalar_lea.vmem %s4, 1
    %v179 = vld [vmem:[%s178] sm:$0x1]
    %v180 = vld [vmem:[%s5] sm:$0x1]
    %s181 = scalar_lea.vmem %s5, 1
    %v182 = vld [vmem:[%s181] sm:$0x1]
    %v183 = vld [vmem:[#allocation2] sm:$0xff]
    %v184 = vld [vmem:[#allocation2 + $0x8] sm:$0xff]
    %v185 = vld [vmem:[#allocation2 + $0x10] sm:$0xff]
    %v186 = vld [vmem:[#allocation2 + $0x18] sm:$0xff]
    %v187 = vld [vmem:[#allocation2 + $0x20] sm:$0xff]
    %v188 = vld [vmem:[#allocation2 + $0x28] sm:$0xff]
    %v189 = vld [vmem:[#allocation2 + $0x30] sm:$0xff]
    %v190 = vld [vmem:[#allocation2 + $0x38] sm:$0xff]
    %v192 = vperm.slane %v177, 0
    %194 = vmatpush.msra.mxu0 %v126
    %195 = vmatpush.msra.mxu0 %v125
    %196 = vmatpush.msra.mxu0 %v124
    %197 = vmatpush.msra.mxu0 %v123
    %198 = vmatpush.msra.mxu0 %v122
    %199 = vmatpush.msra.mxu0 %v121
    %200 = vmatpush.msra.mxu0 %v120
    %201 = vmatpush.msra.mxu0 %v119
    %202 = vmatpush.msra.mxu0 %v118
    %203 = vmatpush.msra.mxu0 %v117
    %204 = vmatpush.msra.mxu0 %v116
    %205 = vmatpush.msra.mxu0 %v115
    %206 = vmatpush.msra.mxu0 %v114
    %207 = vmatpush.msra.mxu0 %v113
    %208 = vmatpush.msra.mxu0 %v112
    %209 = vmatpush.msra.mxu0 %v111
    %210 = vmatmul.f32.gmra.mxu0 %v183
    %v211 = vpop.f32.mrf.mxu0
    %v212 = vadd.f32 %v192, %v211
    %213 = vmatmul.f32.gmra.mxu0 %v184
    %v214 = vpop.f32.mrf.mxu0
    %v215 = vadd.f32 %v192, %v214
    %216 = vmatmul.f32.gmra.mxu0 %v185
    %v217 = vpop.f32.mrf.mxu0
    %v218 = vadd.f32 %v192, %v217
    %219 = vmatmul.f32.gmra.mxu0 %v186
    %v220 = vpop.f32.mrf.mxu0
    %v221 = vadd.f32 %v192, %v220
    %222 = vmatmul.f32.gmra.mxu0 %v187
    %v223 = vpop.f32.mrf.mxu0
    %v224 = vadd.f32 %v192, %v223
    %225 = vmatmul.f32.gmra.mxu0 %v188
    %v226 = vpop.f32.mrf.mxu0
    %v227 = vadd.f32 %v192, %v226
    %228 = vmatmul.f32.gmra.mxu0 %v189
    %v229 = vpop.f32.mrf.mxu0
    %v230 = vadd.f32 %v192, %v229
    %231 = vmatmul.f32.gmra.mxu0 %v190
    %v232 = vpop.f32.mrf.mxu0
    %v233 = vadd.f32 %v192, %v232
    %234 = vdwg.mxu0
    %v235 = vld [vmem:[#allocation5] sm:$0xff]
    %s236 = scalar_lea.vmem [#allocation5], 8
    %v237 = vld [vmem:[%s236] sm:$0xff]
    %v239 = vperm.slane %v180, 0
    %241 = vmatpush.msra.mxu0 %v159
    %242 = vmatpush.msra.mxu0 %v158
    %243 = vmatpush.msra.mxu0 %v157
    %244 = vmatpush.msra.mxu0 %v156
    %245 = vmatpush.msra.mxu0 %v155
    %246 = vmatpush.msra.mxu0 %v154
    %247 = vmatpush.msra.mxu0 %v153
    %248 = vmatpush.msra.mxu0 %v152
    %249 = vmatpush.msra.mxu0 %v151
    %250 = vmatpush.msra.mxu0 %v150
    %251 = vmatpush.msra.mxu0 %v149
    %252 = vmatpush.msra.mxu0 %v148
    %253 = vmatpush.msra.mxu0 %v147
    %254 = vmatpush.msra.mxu0 %v146
    %255 = vmatpush.msra.mxu0 %v145
    %256 = vmatpush.msra.mxu0 %v144
    %257 = vmatmul.f32.gmra.mxu0 %v235
    %v258 = vpop.f32.mrf.mxu0
    %v259 = vadd.f32 %v239, %v258
    %260 = vdwg.mxu0
    %v261 = vadd.f32 %v212, %v259
    %v262 = vxor.u32 %v261, 2147483648
    %v263 = vmul.f32 %v262, 1.442695
    %v264 = vpow.pop %v263
    %v265 = vadd.f32 %v264, 1.0
    %v266 = vrcp.pop %v265
    %v267 = vmul.f32 %v265, %v266
    %v268 = vsub.f32 1.0, %v267
    %v269 = vmul.f32 %v266, %v268
    %v270 = vadd.f32 %v266, %v269
    %vm271 = vweird.f32 %v265
    %vm272 = vweird.f32 %v266
    %vm273 = vmor %vm271, %vm272
    %v274 = vsel %vm273, %v266, %v270
    %v275 = vand.u32 2147483647, %v265
    %vm276 = vcmp.eq.f32.partialorder %v275, 8.507059e+37
    %v277 = vand.u32 %v265, 2147483648
    %v278 = vor.u32 1.1754944e-38, %v277
    %v279 = vsel %vm276, %v278, %v274
    %v280 = vmul.f32 1.0, %v279
    %281 = vrot.lane.b32.xlu0 %v280, 64
    %v282 = vpop.permute.xlu0 %281
    %v283 = vmul.f32 %v282, %v259
    %v284 = vadd.f32 %v212, %v283
    %v285 = vtanh.pop %v284
    %286 = vrot.lane.b32.xlu0 %v280, 96
    %v287 = vpop.permute.xlu0 %286
    %288 = vrot.lane.b32.xlu0 %v285, 64
    %v289 = vpop.permute.xlu0 %288
    %v290 = vsub.f32 1.0, %v287
    %v291 = vmul.f32 %v290, %v289
    %v292 = vmul.f32 %v287, %v235
    %v293 = vadd.f32 %v291, %v292
    %294 = vmatpush.msra.mxu0 %v159
    %295 = vmatpush.msra.mxu0 %v158
    %296 = vmatpush.msra.mxu0 %v157
    %297 = vmatpush.msra.mxu0 %v156
    %298 = vmatpush.msra.mxu0 %v155
    %299 = vmatpush.msra.mxu0 %v154
    %300 = vmatpush.msra.mxu0 %v153
    %301 = vmatpush.msra.mxu0 %v152
    %302 = vmatpush.msra.mxu0 %v151
    %303 = vmatpush.msra.mxu0 %v150
    %304 = vmatpush.msra.mxu0 %v149
    %305 = vmatpush.msra.mxu0 %v148
    %306 = vmatpush.msra.mxu0 %v147
    %307 = vmatpush.msra.mxu0 %v146
    %308 = vmatpush.msra.mxu0 %v145
    %309 = vmatpush.msra.mxu0 %v144
    %310 = vmatmul.f32.gmra.mxu0 %v293
    %v311 = vpop.f32.mrf.mxu0
    %v312 = vadd.f32 %v239, %v311
    %313 = vdwg.mxu0
    %v314 = vadd.f32 %v215, %v312
    %v315 = vxor.u32 %v314, 2147483648
    %v316 = vmul.f32 %v315, 1.442695
    %v317 = vpow.pop %v316
    %v318 = vadd.f32 %v317, 1.0
    %v319 = vrcp.pop %v318
    %v320 = vmul.f32 %v318, %v319
    %v321 = vsub.f32 1.0, %v320
    %v322 = vmul.f32 %v319, %v321
    %v323 = vadd.f32 %v319, %v322
    %vm324 = vweird.f32 %v318
    %vm325 = vweird.f32 %v319
    %vm326 = vmor %vm324, %vm325
    %v327 = vsel %vm326, %v319, %v323
    %v328 = vand.u32 2147483647, %v318
    %vm329 = vcmp.eq.f32.partialorder %v328, 8.507059e+37
    %v330 = vand.u32 %v318, 2147483648
    %v331 = vor.u32 1.1754944e-38, %v330
    %v332 = vsel %vm329, %v331, %v327
    %v333 = vmul.f32 1.0, %v332
    %334 = vrot.lane.b32.xlu0 %v333, 64
    %v335 = vpop.permute.xlu0 %334
    %v336 = vmul.f32 %v335, %v312
    %v337 = vadd.f32 %v215, %v336
    %v338 = vtanh.pop %v337
    %339 = vrot.lane.b32.xlu0 %v333, 96
    %v340 = vpop.permute.xlu0 %339
    %341 = vrot.lane.b32.xlu0 %v338, 64
    %v342 = vpop.permute.xlu0 %341
    %v343 = vsub.f32 1.0, %v340
    %v344 = vmul.f32 %v343, %v342
    %v345 = vmul.f32 %v340, %v293
    %v346 = vadd.f32 %v344, %v345
    %v348 = vperm.slane %v179, 0
    %350 = vmatpush.msra.mxu0 %v143
    %351 = vmatpush.msra.mxu0 %v142
    %352 = vmatpush.msra.mxu0 %v141
    %353 = vmatpush.msra.mxu0 %v140
    %354 = vmatpush.msra.mxu0 %v139
    %355 = vmatpush.msra.mxu0 %v138
    %356 = vmatpush.msra.mxu0 %v137
    %357 = vmatpush.msra.mxu0 %v136
    %358 = vmatpush.msra.mxu0 %v135
    %359 = vmatpush.msra.mxu0 %v134
    %360 = vmatpush.msra.mxu0 %v133
    %361 = vmatpush.msra.mxu0 %v132
    %362 = vmatpush.msra.mxu0 %v131
    %363 = vmatpush.msra.mxu0 %v130
    %364 = vmatpush.msra.mxu0 %v129
    %365 = vmatpush.msra.mxu0 %v128
    %366 = vmatmul.f32.gmra.mxu0 %v293
    %v367 = vpop.f32.mrf.mxu0
    %v368 = vadd.f32 %v348, %v367
    %369 = vdwg.mxu0
    %v371 = vperm.slane %v182, 0
    %373 = vmatpush.msra.mxu0 %v176
    %374 = vmatpush.msra.mxu0 %v175
    %375 = vmatpush.msra.mxu0 %v174
    %376 = vmatpush.msra.mxu0 %v173
    %377 = vmatpush.msra.mxu0 %v172
    %378 = vmatpush.msra.mxu0 %v171
    %379 = vmatpush.msra.mxu0 %v170
    %380 = vmatpush.msra.mxu0 %v169
    %381 = vmatpush.msra.mxu0 %v168
    %382 = vmatpush.msra.mxu0 %v167
    %383 = vmatpush.msra.mxu0 %v166
    %384 = vmatpush.msra.mxu0 %v165
    %385 = vmatpush.msra.mxu0 %v164
    %386 = vmatpush.msra.mxu0 %v163
    %387 = vmatpush.msra.mxu0 %v162
    %388 = vmatpush.msra.mxu0 %v161
    %389 = vmatmul.f32.gmra.mxu0 %v237
    %v390 = vpop.f32.mrf.mxu0
    %v391 = vadd.f32 %v371, %v390
    %392 = vdwg.mxu0
    %v393 = vadd.f32 %v368, %v391
    %v394 = vxor.u32 %v393, 2147483648
    %v395 = vmul.f32 %v394, 1.442695
    %v396 = vpow.pop %v395
    %v397 = vadd.f32 %v396, 1.0
    %v398 = vrcp.pop %v397
    %v399 = vmul.f32 %v397, %v398
    %v400 = vsub.f32 1.0, %v399
    %v401 = vmul.f32 %v398, %v400
    %v402 = vadd.f32 %v398, %v401
    %vm403 = vweird.f32 %v397
    %vm404 = vweird.f32 %v398
    %vm405 = vmor %vm403, %vm404
    %v406 = vsel %vm405, %v398, %v402
    %v407 = vand.u32 2147483647, %v397
    %vm408 = vcmp.eq.f32.partialorder %v407, 8.507059e+37
    %v409 = vand.u32 %v397, 2147483648
    %v410 = vor.u32 1.1754944e-38, %v409
    %v411 = vsel %vm408, %v410, %v406
    %v412 = vmul.f32 1.0, %v411
    %413 = vrot.lane.b32.xlu0 %v412, 64
    %v414 = vpop.permute.xlu0 %413
    %v415 = vmul.f32 %v414, %v391
    %v416 = vadd.f32 %v368, %v415
    %v417 = vtanh.pop %v416
    %418 = vrot.lane.b32.xlu0 %v412, 96
    %v419 = vpop.permute.xlu0 %418
    %420 = vrot.lane.b32.xlu0 %v417, 64
    %v421 = vpop.permute.xlu0 %420
    %v422 = vsub.f32 1.0, %v419
    %v423 = vmul.f32 %v422, %v421
    %v424 = vmul.f32 %v419, %v237
    %v425 = vadd.f32 %v423, %v424
    %426 = vmatpush.msra.mxu0 %v159
    %427 = vmatpush.msra.mxu0 %v158
    %428 = vmatpush.msra.mxu0 %v157
    %429 = vmatpush.msra.mxu0 %v156
    %430 = vmatpush.msra.mxu0 %v155
    %431 = vmatpush.msra.mxu0 %v154
    %432 = vmatpush.msra.mxu0 %v153
    %433 = vmatpush.msra.mxu0 %v152
    %434 = vmatpush.msra.mxu0 %v151
    %435 = vmatpush.msra.mxu0 %v150
    %436 = vmatpush.msra.mxu0 %v149
    %437 = vmatpush.msra.mxu0 %v148
    %438 = vmatpush.msra.mxu0 %v147
    %439 = vmatpush.msra.mxu0 %v146
    %440 = vmatpush.msra.mxu0 %v145
    %441 = vmatpush.msra.mxu0 %v144
    %442 = vmatmul.f32.gmra.mxu0 %v346
    %v443 = vpop.f32.mrf.mxu0
    %v444 = vadd.f32 %v239, %v443
    %445 = vdwg.mxu0
    %v446 = vadd.f32 %v218, %v444
    %v447 = vxor.u32 %v446, 2147483648
    %v448 = vmul.f32 %v447, 1.442695
    %v449 = vpow.pop %v448
    %v450 = vadd.f32 %v449, 1.0
    %v451 = vrcp.pop %v450
    %v452 = vmul.f32 %v450, %v451
    %v453 = vsub.f32 1.0, %v452
    %v454 = vmul.f32 %v451, %v453
    %v455 = vadd.f32 %v451, %v454
    %vm456 = vweird.f32 %v450
    %vm457 = vweird.f32 %v451
    %vm458 = vmor %vm456, %vm457
    %v459 = vsel %vm458, %v451, %v455
    %v460 = vand.u32 2147483647, %v450
    %vm461 = vcmp.eq.f32.partialorder %v460, 8.507059e+37
    %v462 = vand.u32 %v450, 2147483648
    %v463 = vor.u32 1.1754944e-38, %v462
    %v464 = vsel %vm461, %v463, %v459
    %v465 = vmul.f32 1.0, %v464
    %466 = vrot.lane.b32.xlu0 %v465, 64
    %v467 = vpop.permute.xlu0 %466
    %v468 = vmul.f32 %v467, %v444
    %v469 = vadd.f32 %v218, %v468
    %v470 = vtanh.pop %v469
    %471 = vrot.lane.b32.xlu0 %v465, 96
    %v472 = vpop.permute.xlu0 %471
    %473 = vrot.lane.b32.xlu0 %v470, 64
    %v474 = vpop.permute.xlu0 %473
    %v475 = vsub.f32 1.0, %v472
    %v476 = vmul.f32 %v475, %v474
    %v477 = vmul.f32 %v472, %v346
    %v478 = vadd.f32 %v476, %v477
    %479 = vmatpush.msra.mxu0 %v143
    %480 = vmatpush.msra.mxu0 %v142
    %481 = vmatpush.msra.mxu0 %v141
    %482 = vmatpush.msra.mxu0 %v140
    %483 = vmatpush.msra.mxu0 %v139
    %484 = vmatpush.msra.mxu0 %v138
    %485 = vmatpush.msra.mxu0 %v137
    %486 = vmatpush.msra.mxu0 %v136
    %487 = vmatpush.msra.mxu0 %v135
    %488 = vmatpush.msra.mxu0 %v134
    %489 = vmatpush.msra.mxu0 %v133
    %490 = vmatpush.msra.mxu0 %v132
    %491 = vmatpush.msra.mxu0 %v131
    %492 = vmatpush.msra.mxu0 %v130
    %493 = vmatpush.msra.mxu0 %v129
    %494 = vmatpush.msra.mxu0 %v128
    %495 = vmatmul.f32.gmra.mxu0 %v346
    %v496 = vpop.f32.mrf.mxu0
    %v497 = vadd.f32 %v348, %v496
    %498 = vdwg.mxu0
    %499 = vmatpush.msra.mxu0 %v176
    %500 = vmatpush.msra.mxu0 %v175
    %501 = vmatpush.msra.mxu0 %v174
    %502 = vmatpush.msra.mxu0 %v173
    %503 = vmatpush.msra.mxu0 %v172
    %504 = vmatpush.msra.mxu0 %v171
    %505 = vmatpush.msra.mxu0 %v170
    %506 = vmatpush.msra.mxu0 %v169
    %507 = vmatpush.msra.mxu0 %v168
    %508 = vmatpush.msra.mxu0 %v167
    %509 = vmatpush.msra.mxu0 %v166
    %510 = vmatpush.msra.mxu0 %v165
    %511 = vmatpush.msra.mxu0 %v164
    %512 = vmatpush.msra.mxu0 %v163
    %513 = vmatpush.msra.mxu0 %v162
    %514 = vmatpush.msra.mxu0 %v161
    %515 = vmatmul.f32.gmra.mxu0 %v425
    %v516 = vpop.f32.mrf.mxu0
    %v517 = vadd.f32 %v371, %v516
    %518 = vdwg.mxu0
    %v519 = vadd.f32 %v497, %v517
    %v520 = vxor.u32 %v519, 2147483648
    %v521 = vmul.f32 %v520, 1.442695
    %v522 = vpow.pop %v521
    %v523 = vadd.f32 %v522, 1.0
    %v524 = vrcp.pop %v523
    %v525 = vmul.f32 %v523, %v524
    %v526 = vsub.f32 1.0, %v525
    %v527 = vmul.f32 %v524, %v526
    %v528 = vadd.f32 %v524, %v527
    %vm529 = vweird.f32 %v523
    %vm530 = vweird.f32 %v524
    %vm531 = vmor %vm529, %vm530
    %v532 = vsel %vm531, %v524, %v528
    %v533 = vand.u32 2147483647, %v523
    %vm534 = vcmp.eq.f32.partialorder %v533, 8.507059e+37
    %v535 = vand.u32 %v523, 2147483648
    %v536 = vor.u32 1.1754944e-38, %v535
    %v537 = vsel %vm534, %v536, %v532
    %v538 = vmul.f32 1.0, %v537
    %539 = vrot.lane.b32.xlu0 %v538, 64
    %v540 = vpop.permute.xlu0 %539
    %v541 = vmul.f32 %v540, %v517
    %v542 = vadd.f32 %v497, %v541
    %v543 = vtanh.pop %v542
    %544 = vrot.lane.b32.xlu0 %v538, 96
    %v545 = vpop.permute.xlu0 %544
    %546 = vrot.lane.b32.xlu0 %v543, 64
    %v547 = vpop.permute.xlu0 %546
    %v548 = vsub.f32 1.0, %v545
    %v549 = vmul.f32 %v548, %v547
    %v550 = vmul.f32 %v545, %v425
    %v551 = vadd.f32 %v549, %v550
    %552 = vmatpush.msra.mxu0 %v159
    %553 = vmatpush.msra.mxu0 %v158
    %554 = vmatpush.msra.mxu0 %v157
    %555 = vmatpush.msra.mxu0 %v156
    %556 = vmatpush.msra.mxu0 %v155
    %557 = vmatpush.msra.mxu0 %v154
    %558 = vmatpush.msra.mxu0 %v153
    %559 = vmatpush.msra.mxu0 %v152
    %560 = vmatpush.msra.mxu0 %v151
    %561 = vmatpush.msra.mxu0 %v150
    %562 = vmatpush.msra.mxu0 %v149
    %563 = vmatpush.msra.mxu0 %v148
    %564 = vmatpush.msra.mxu0 %v147
    %565 = vmatpush.msra.mxu0 %v146
    %566 = vmatpush.msra.mxu0 %v145
    %567 = vmatpush.msra.mxu0 %v144
    %568 = vmatmul.f32.gmra.mxu0 %v478
    %v569 = vpop.f32.mrf.mxu0
    %v570 = vadd.f32 %v239, %v569
    %571 = vdwg.mxu0
    %v572 = vadd.f32 %v221, %v570
    %v573 = vxor.u32 %v572, 2147483648
    %v574 = vmul.f32 %v573, 1.442695
    %v575 = vpow.pop %v574
    %v576 = vadd.f32 %v575, 1.0
    %v577 = vrcp.pop %v576
    %v578 = vmul.f32 %v576, %v577
    %v579 = vsub.f32 1.0, %v578
    %v580 = vmul.f32 %v577, %v579
    %v581 = vadd.f32 %v577, %v580
    %vm582 = vweird.f32 %v576
    %vm583 = vweird.f32 %v577
    %vm584 = vmor %vm582, %vm583
    %v585 = vsel %vm584, %v577, %v581
    %v586 = vand.u32 2147483647, %v576
    %vm587 = vcmp.eq.f32.partialorder %v586, 8.507059e+37
    %v588 = vand.u32 %v576, 2147483648
    %v589 = vor.u32 1.1754944e-38, %v588
    %v590 = vsel %vm587, %v589, %v585
    %v591 = vmul.f32 1.0, %v590
    %592 = vrot.lane.b32.xlu0 %v591, 64
    %v593 = vpop.permute.xlu0 %592
    %v594 = vmul.f32 %v593, %v570
    %v595 = vadd.f32 %v221, %v594
    %v596 = vtanh.pop %v595
    %597 = vrot.lane.b32.xlu0 %v591, 96
    %v598 = vpop.permute.xlu0 %597
    %599 = vrot.lane.b32.xlu0 %v596, 64
    %v600 = vpop.permute.xlu0 %599
    %v601 = vsub.f32 1.0, %v598
    %v602 = vmul.f32 %v601, %v600
    %v603 = vmul.f32 %v598, %v478
    %v604 = vadd.f32 %v602, %v603
    %605 = vmatpush.msra.mxu0 %v143
    %606 = vmatpush.msra.mxu0 %v142
    %607 = vmatpush.msra.mxu0 %v141
    %608 = vmatpush.msra.mxu0 %v140
    %609 = vmatpush.msra.mxu0 %v139
    %610 = vmatpush.msra.mxu0 %v138
    %611 = vmatpush.msra.mxu0 %v137
    %612 = vmatpush.msra.mxu0 %v136
    %613 = vmatpush.msra.mxu0 %v135
    %614 = vmatpush.msra.mxu0 %v134
    %615 = vmatpush.msra.mxu0 %v133
    %616 = vmatpush.msra.mxu0 %v132
    %617 = vmatpush.msra.mxu0 %v131
    %618 = vmatpush.msra.mxu0 %v130
    %619 = vmatpush.msra.mxu0 %v129
    %620 = vmatpush.msra.mxu0 %v128
    %621 = vmatmul.f32.gmra.mxu0 %v478
    %v622 = vpop.f32.mrf.mxu0
    %v623 = vadd.f32 %v348, %v622
    %624 = vdwg.mxu0
    %625 = vmatpush.msra.mxu0 %v176
    %626 = vmatpush.msra.mxu0 %v175
    %627 = vmatpush.msra.mxu0 %v174
    %628 = vmatpush.msra.mxu0 %v173
    %629 = vmatpush.msra.mxu0 %v172
    %630 = vmatpush.msra.mxu0 %v171
    %631 = vmatpush.msra.mxu0 %v170
    %632 = vmatpush.msra.mxu0 %v169
    %633 = vmatpush.msra.mxu0 %v168
    %634 = vmatpush.msra.mxu0 %v167
    %635 = vmatpush.msra.mxu0 %v166
    %636 = vmatpush.msra.mxu0 %v165
    %637 = vmatpush.msra.mxu0 %v164
    %638 = vmatpush.msra.mxu0 %v163
    %639 = vmatpush.msra.mxu0 %v162
    %640 = vmatpush.msra.mxu0 %v161
    %641 = vmatmul.f32.gmra.mxu0 %v551
    %v642 = vpop.f32.mrf.mxu0
    %v643 = vadd.f32 %v371, %v642
    %644 = vdwg.mxu0
    %v645 = vadd.f32 %v623, %v643
    %v646 = vxor.u32 %v645, 2147483648
    %v647 = vmul.f32 %v646, 1.442695
    %v648 = vpow.pop %v647
    %v649 = vadd.f32 %v648, 1.0
    %v650 = vrcp.pop %v649
    %v651 = vmul.f32 %v649, %v650
    %v652 = vsub.f32 1.0, %v651
    %v653 = vmul.f32 %v650, %v652
    %v654 = vadd.f32 %v650, %v653
    %vm655 = vweird.f32 %v649
    %vm656 = vweird.f32 %v650
    %vm657 = vmor %vm655, %vm656
    %v658 = vsel %vm657, %v650, %v654
    %v659 = vand.u32 2147483647, %v649
    %vm660 = vcmp.eq.f32.partialorder %v659, 8.507059e+37
    %v661 = vand.u32 %v649, 2147483648
    %v662 = vor.u32 1.1754944e-38, %v661
    %v663 = vsel %vm660, %v662, %v658
    %v664 = vmul.f32 1.0, %v663
    %665 = vrot.lane.b32.xlu0 %v664, 64
    %v666 = vpop.permute.xlu0 %665
    %v667 = vmul.f32 %v666, %v643
    %v668 = vadd.f32 %v623, %v667
    %v669 = vtanh.pop %v668
    %670 = vrot.lane.b32.xlu0 %v664, 96
    %v671 = vpop.permute.xlu0 %670
    %672 = vrot.lane.b32.xlu0 %v669, 64
    %v673 = vpop.permute.xlu0 %672
    %v674 = vsub.f32 1.0, %v671
    %v675 = vmul.f32 %v674, %v673
    %v676 = vmul.f32 %v671, %v551
    %v677 = vadd.f32 %v675, %v676
    %678 = vmatpush.msra.mxu0 %v159
    %679 = vmatpush.msra.mxu0 %v158
    %680 = vmatpush.msra.mxu0 %v157
    %681 = vmatpush.msra.mxu0 %v156
    %682 = vmatpush.msra.mxu0 %v155
    %683 = vmatpush.msra.mxu0 %v154
    %684 = vmatpush.msra.mxu0 %v153
    %685 = vmatpush.msra.mxu0 %v152
    %686 = vmatpush.msra.mxu0 %v151
    %687 = vmatpush.msra.mxu0 %v150
    %688 = vmatpush.msra.mxu0 %v149
    %689 = vmatpush.msra.mxu0 %v148
    %690 = vmatpush.msra.mxu0 %v147
    %691 = vmatpush.msra.mxu0 %v146
    %692 = vmatpush.msra.mxu0 %v145
    %693 = vmatpush.msra.mxu0 %v144
    %694 = vmatmul.f32.gmra.mxu0 %v604
    %v695 = vpop.f32.mrf.mxu0
    %v696 = vadd.f32 %v239, %v695
    %697 = vdwg.mxu0
    %v698 = vadd.f32 %v224, %v696
    %v699 = vxor.u32 %v698, 2147483648
    %v700 = vmul.f32 %v699, 1.442695
    %v701 = vpow.pop %v700
    %v702 = vadd.f32 %v701, 1.0
    %v703 = vrcp.pop %v702
    %v704 = vmul.f32 %v702, %v703
    %v705 = vsub.f32 1.0, %v704
    %v706 = vmul.f32 %v703, %v705
    %v707 = vadd.f32 %v703, %v706
    %vm708 = vweird.f32 %v702
    %vm709 = vweird.f32 %v703
    %vm710 = vmor %vm708, %vm709
    %v711 = vsel %vm710, %v703, %v707
    %v712 = vand.u32 2147483647, %v702
    %vm713 = vcmp.eq.f32.partialorder %v712, 8.507059e+37
    %v714 = vand.u32 %v702, 2147483648
    %v715 = vor.u32 1.1754944e-38, %v714
    %v716 = vsel %vm713, %v715, %v711
    %v717 = vmul.f32 1.0, %v716
    %718 = vrot.lane.b32.xlu0 %v717, 64
    %v719 = vpop.permute.xlu0 %718
    %v720 = vmul.f32 %v719, %v696
    %v721 = vadd.f32 %v224, %v720
    %v722 = vtanh.pop %v721
    %723 = vrot.lane.b32.xlu0 %v717, 96
    %v724 = vpop.permute.xlu0 %723
    %725 = vrot.lane.b32.xlu0 %v722, 64
    %v726 = vpop.permute.xlu0 %725
    %v727 = vsub.f32 1.0, %v724
    %v728 = vmul.f32 %v727, %v726
    %v729 = vmul.f32 %v724, %v604
    %v730 = vadd.f32 %v728, %v729
    %731 = vmatpush.msra.mxu0 %v143
    %732 = vmatpush.msra.mxu0 %v142
    %733 = vmatpush.msra.mxu0 %v141
    %734 = vmatpush.msra.mxu0 %v140
    %735 = vmatpush.msra.mxu0 %v139
    %736 = vmatpush.msra.mxu0 %v138
    %737 = vmatpush.msra.mxu0 %v137
    %738 = vmatpush.msra.mxu0 %v136
    %739 = vmatpush.msra.mxu0 %v135
    %740 = vmatpush.msra.mxu0 %v134
    %741 = vmatpush.msra.mxu0 %v133
    %742 = vmatpush.msra.mxu0 %v132
    %743 = vmatpush.msra.mxu0 %v131
    %744 = vmatpush.msra.mxu0 %v130
    %745 = vmatpush.msra.mxu0 %v129
    %746 = vmatpush.msra.mxu0 %v128
    %747 = vmatmul.f32.gmra.mxu0 %v604
    %v748 = vpop.f32.mrf.mxu0
    %v749 = vadd.f32 %v348, %v748
    %750 = vdwg.mxu0
    %751 = vmatpush.msra.mxu0 %v176
    %752 = vmatpush.msra.mxu0 %v175
    %753 = vmatpush.msra.mxu0 %v174
    %754 = vmatpush.msra.mxu0 %v173
    %755 = vmatpush.msra.mxu0 %v172
    %756 = vmatpush.msra.mxu0 %v171
    %757 = vmatpush.msra.mxu0 %v170
    %758 = vmatpush.msra.mxu0 %v169
    %759 = vmatpush.msra.mxu0 %v168
    %760 = vmatpush.msra.mxu0 %v167
    %761 = vmatpush.msra.mxu0 %v166
    %762 = vmatpush.msra.mxu0 %v165
    %763 = vmatpush.msra.mxu0 %v164
    %764 = vmatpush.msra.mxu0 %v163
    %765 = vmatpush.msra.mxu0 %v162
    %766 = vmatpush.msra.mxu0 %v161
    %767 = vmatmul.f32.gmra.mxu0 %v677
    %v768 = vpop.f32.mrf.mxu0
    %v769 = vadd.f32 %v371, %v768
    %770 = vdwg.mxu0
    %v771 = vadd.f32 %v749, %v769
    %v772 = vxor.u32 %v771, 2147483648
    %v773 = vmul.f32 %v772, 1.442695
    %v774 = vpow.pop %v773
    %v775 = vadd.f32 %v774, 1.0
    %v776 = vrcp.pop %v775
    %v777 = vmul.f32 %v775, %v776
    %v778 = vsub.f32 1.0, %v777
    %v779 = vmul.f32 %v776, %v778
    %v780 = vadd.f32 %v776, %v779
    %vm781 = vweird.f32 %v775
    %vm782 = vweird.f32 %v776
    %vm783 = vmor %vm781, %vm782
    %v784 = vsel %vm783, %v776, %v780
    %v785 = vand.u32 2147483647, %v775
    %vm786 = vcmp.eq.f32.partialorder %v785, 8.507059e+37
    %v787 = vand.u32 %v775, 2147483648
    %v788 = vor.u32 1.1754944e-38, %v787
    %v789 = vsel %vm786, %v788, %v784
    %v790 = vmul.f32 1.0, %v789
    %791 = vrot.lane.b32.xlu0 %v790, 64
    %v792 = vpop.permute.xlu0 %791
    %v793 = vmul.f32 %v792, %v769
    %v794 = vadd.f32 %v749, %v793
    %v795 = vtanh.pop %v794
    %796 = vrot.lane.b32.xlu0 %v790, 96
    %v797 = vpop.permute.xlu0 %796
    %798 = vrot.lane.b32.xlu0 %v795, 64
    %v799 = vpop.permute.xlu0 %798
    %v800 = vsub.f32 1.0, %v797
    %v801 = vmul.f32 %v800, %v799
    %v802 = vmul.f32 %v797, %v677
    %v803 = vadd.f32 %v801, %v802
    %804 = vmatpush.msra.mxu0 %v159
    %805 = vmatpush.msra.mxu0 %v158
    %806 = vmatpush.msra.mxu0 %v157
    %807 = vmatpush.msra.mxu0 %v156
    %808 = vmatpush.msra.mxu0 %v155
    %809 = vmatpush.msra.mxu0 %v154
    %810 = vmatpush.msra.mxu0 %v153
    %811 = vmatpush.msra.mxu0 %v152
    %812 = vmatpush.msra.mxu0 %v151
    %813 = vmatpush.msra.mxu0 %v150
    %814 = vmatpush.msra.mxu0 %v149
    %815 = vmatpush.msra.mxu0 %v148
    %816 = vmatpush.msra.mxu0 %v147
    %817 = vmatpush.msra.mxu0 %v146
    %818 = vmatpush.msra.mxu0 %v145
    %819 = vmatpush.msra.mxu0 %v144
    %820 = vmatmul.f32.gmra.mxu0 %v730
    %v821 = vpop.f32.mrf.mxu0
    %v822 = vadd.f32 %v239, %v821
    %823 = vdwg.mxu0
    %v824 = vadd.f32 %v227, %v822
    %v825 = vxor.u32 %v824, 2147483648
    %v826 = vmul.f32 %v825, 1.442695
    %v827 = vpow.pop %v826
    %v828 = vadd.f32 %v827, 1.0
    %v829 = vrcp.pop %v828
    %v830 = vmul.f32 %v828, %v829
    %v831 = vsub.f32 1.0, %v830
    %v832 = vmul.f32 %v829, %v831
    %v833 = vadd.f32 %v829, %v832
    %vm834 = vweird.f32 %v828
    %vm835 = vweird.f32 %v829
    %vm836 = vmor %vm834, %vm835
    %v837 = vsel %vm836, %v829, %v833
    %v838 = vand.u32 2147483647, %v828
    %vm839 = vcmp.eq.f32.partialorder %v838, 8.507059e+37
    %v840 = vand.u32 %v828, 2147483648
    %v841 = vor.u32 1.1754944e-38, %v840
    %v842 = vsel %vm839, %v841, %v837
    %v843 = vmul.f32 1.0, %v842
    %844 = vrot.lane.b32.xlu0 %v843, 64
    %v845 = vpop.permute.xlu0 %844
    %v846 = vmul.f32 %v845, %v822
    %v847 = vadd.f32 %v227, %v846
    %v848 = vtanh.pop %v847
    %849 = vrot.lane.b32.xlu0 %v843, 96
    %v850 = vpop.permute.xlu0 %849
    %851 = vrot.lane.b32.xlu0 %v848, 64
    %v852 = vpop.permute.xlu0 %851
    %v853 = vsub.f32 1.0, %v850
    %v854 = vmul.f32 %v853, %v852
    %v855 = vmul.f32 %v850, %v730
    %v856 = vadd.f32 %v854, %v855
    %857 = vmatpush.msra.mxu0 %v143
    %858 = vmatpush.msra.mxu0 %v142
    %859 = vmatpush.msra.mxu0 %v141
    %860 = vmatpush.msra.mxu0 %v140
    %861 = vmatpush.msra.mxu0 %v139
    %862 = vmatpush.msra.mxu0 %v138
    %863 = vmatpush.msra.mxu0 %v137
    %864 = vmatpush.msra.mxu0 %v136
    %865 = vmatpush.msra.mxu0 %v135
    %866 = vmatpush.msra.mxu0 %v134
    %867 = vmatpush.msra.mxu0 %v133
    %868 = vmatpush.msra.mxu0 %v132
    %869 = vmatpush.msra.mxu0 %v131
    %870 = vmatpush.msra.mxu0 %v130
    %871 = vmatpush.msra.mxu0 %v129
    %872 = vmatpush.msra.mxu0 %v128
    %873 = vmatmul.f32.gmra.mxu0 %v730
    %v874 = vpop.f32.mrf.mxu0
    %v875 = vadd.f32 %v348, %v874
    %876 = vdwg.mxu0
    %877 = vmatpush.msra.mxu0 %v176
    %878 = vmatpush.msra.mxu0 %v175
    %879 = vmatpush.msra.mxu0 %v174
    %880 = vmatpush.msra.mxu0 %v173
    %881 = vmatpush.msra.mxu0 %v172
    %882 = vmatpush.msra.mxu0 %v171
    %883 = vmatpush.msra.mxu0 %v170
    %884 = vmatpush.msra.mxu0 %v169
    %885 = vmatpush.msra.mxu0 %v168
    %886 = vmatpush.msra.mxu0 %v167
    %887 = vmatpush.msra.mxu0 %v166
    %888 = vmatpush.msra.mxu0 %v165
    %889 = vmatpush.msra.mxu0 %v164
    %890 = vmatpush.msra.mxu0 %v163
    %891 = vmatpush.msra.mxu0 %v162
    %892 = vmatpush.msra.mxu0 %v161
    %893 = vmatmul.f32.gmra.mxu0 %v803
    %v894 = vpop.f32.mrf.mxu0
    %v895 = vadd.f32 %v371, %v894
    %896 = vdwg.mxu0
    %v897 = vadd.f32 %v875, %v895
    %v898 = vxor.u32 %v897, 2147483648
    %v899 = vmul.f32 %v898, 1.442695
    %v900 = vpow.pop %v899
    %v901 = vadd.f32 %v900, 1.0
    %v902 = vrcp.pop %v901
    %v903 = vmul.f32 %v901, %v902
    %v904 = vsub.f32 1.0, %v903
    %v905 = vmul.f32 %v902, %v904
    %v906 = vadd.f32 %v902, %v905
    %vm907 = vweird.f32 %v901
    %vm908 = vweird.f32 %v902
    %vm909 = vmor %vm907, %vm908
    %v910 = vsel %vm909, %v902, %v906
    %v911 = vand.u32 2147483647, %v901
    %vm912 = vcmp.eq.f32.partialorder %v911, 8.507059e+37
    %v913 = vand.u32 %v901, 2147483648
    %v914 = vor.u32 1.1754944e-38, %v913
    %v915 = vsel %vm912, %v914, %v910
    %v916 = vmul.f32 1.0, %v915
    %917 = vrot.lane.b32.xlu0 %v916, 64
    %v918 = vpop.permute.xlu0 %917
    %v919 = vmul.f32 %v918, %v895
    %v920 = vadd.f32 %v875, %v919
    %v921 = vtanh.pop %v920
    %922 = vrot.lane.b32.xlu0 %v916, 96
    %v923 = vpop.permute.xlu0 %922
    %924 = vrot.lane.b32.xlu0 %v921, 64
    %v925 = vpop.permute.xlu0 %924
    %v926 = vsub.f32 1.0, %v923
    %v927 = vmul.f32 %v926, %v925
    %v928 = vmul.f32 %v923, %v803
    %v929 = vadd.f32 %v927, %v928
    %930 = vmatpush.msra.mxu0 %v159
    %931 = vmatpush.msra.mxu0 %v158
    %932 = vmatpush.msra.mxu0 %v157
    %933 = vmatpush.msra.mxu0 %v156
    %934 = vmatpush.msra.mxu0 %v155
    %935 = vmatpush.msra.mxu0 %v154
    %936 = vmatpush.msra.mxu0 %v153
    %937 = vmatpush.msra.mxu0 %v152
    %938 = vmatpush.msra.mxu0 %v151
    %939 = vmatpush.msra.mxu0 %v150
    %940 = vmatpush.msra.mxu0 %v149
    %941 = vmatpush.msra.mxu0 %v148
    %942 = vmatpush.msra.mxu0 %v147
    %943 = vmatpush.msra.mxu0 %v146
    %944 = vmatpush.msra.mxu0 %v145
    %945 = vmatpush.msra.mxu0 %v144
    %946 = vmatmul.f32.gmra.mxu0 %v856
    %v947 = vpop.f32.mrf.mxu0
    %v948 = vadd.f32 %v239, %v947
    %949 = vdwg.mxu0
    %v950 = vadd.f32 %v230, %v948
    %v951 = vxor.u32 %v950, 2147483648
    %v952 = vmul.f32 %v951, 1.442695
    %v953 = vpow.pop %v952
    %v954 = vadd.f32 %v953, 1.0
    %v955 = vrcp.pop %v954
    %v956 = vmul.f32 %v954, %v955
    %v957 = vsub.f32 1.0, %v956
    %v958 = vmul.f32 %v955, %v957
    %v959 = vadd.f32 %v955, %v958
    %vm960 = vweird.f32 %v954
    %vm961 = vweird.f32 %v955
    %vm962 = vmor %vm960, %vm961
    %v963 = vsel %vm962, %v955, %v959
    %v964 = vand.u32 2147483647, %v954
    %vm965 = vcmp.eq.f32.partialorder %v964, 8.507059e+37
    %v966 = vand.u32 %v954, 2147483648
    %v967 = vor.u32 1.1754944e-38, %v966
    %v968 = vsel %vm965, %v967, %v963
    %v969 = vmul.f32 1.0, %v968
    %970 = vrot.lane.b32.xlu0 %v969, 64
    %v971 = vpop.permute.xlu0 %970
    %v972 = vmul.f32 %v971, %v948
    %v973 = vadd.f32 %v230, %v972
    %v974 = vtanh.pop %v973
    %975 = vrot.lane.b32.xlu0 %v969, 96
    %v976 = vpop.permute.xlu0 %975
    %977 = vrot.lane.b32.xlu0 %v974, 64
    %v978 = vpop.permute.xlu0 %977
    %v979 = vsub.f32 1.0, %v976
    %v980 = vmul.f32 %v979, %v978
    %v981 = vmul.f32 %v976, %v856
    %v982 = vadd.f32 %v980, %v981
    %983 = vmatpush.msra.mxu0 %v143
    %984 = vmatpush.msra.mxu0 %v142
    %985 = vmatpush.msra.mxu0 %v141
    %986 = vmatpush.msra.mxu0 %v140
    %987 = vmatpush.msra.mxu0 %v139
    %988 = vmatpush.msra.mxu0 %v138
    %989 = vmatpush.msra.mxu0 %v137
    %990 = vmatpush.msra.mxu0 %v136
    %991 = vmatpush.msra.mxu0 %v135
    %992 = vmatpush.msra.mxu0 %v134
    %993 = vmatpush.msra.mxu0 %v133
    %994 = vmatpush.msra.mxu0 %v132
    %995 = vmatpush.msra.mxu0 %v131
    %996 = vmatpush.msra.mxu0 %v130
    %997 = vmatpush.msra.mxu0 %v129
    %998 = vmatpush.msra.mxu0 %v128
    %999 = vmatmul.f32.gmra.mxu0 %v856
    %v1000 = vpop.f32.mrf.mxu0
    %v1001 = vadd.f32 %v348, %v1000
    %1002 = vdwg.mxu0
    %1003 = vmatpush.msra.mxu0 %v176
    %1004 = vmatpush.msra.mxu0 %v175
    %1005 = vmatpush.msra.mxu0 %v174
    %1006 = vmatpush.msra.mxu0 %v173
    %1007 = vmatpush.msra.mxu0 %v172
    %1008 = vmatpush.msra.mxu0 %v171
    %1009 = vmatpush.msra.mxu0 %v170
    %1010 = vmatpush.msra.mxu0 %v169
    %1011 = vmatpush.msra.mxu0 %v168
    %1012 = vmatpush.msra.mxu0 %v167
    %1013 = vmatpush.msra.mxu0 %v166
    %1014 = vmatpush.msra.mxu0 %v165
    %1015 = vmatpush.msra.mxu0 %v164
    %1016 = vmatpush.msra.mxu0 %v163
    %1017 = vmatpush.msra.mxu0 %v162
    %1018 = vmatpush.msra.mxu0 %v161
    %1019 = vmatmul.f32.gmra.mxu0 %v929
    %v1020 = vpop.f32.mrf.mxu0
    %v1021 = vadd.f32 %v371, %v1020
    %1022 = vdwg.mxu0
    %v1023 = vadd.f32 %v1001, %v1021
    %v1024 = vxor.u32 %v1023, 2147483648
    %v1025 = vmul.f32 %v1024, 1.442695
    %v1026 = vpow.pop %v1025
    %v1027 = vadd.f32 %v1026, 1.0
    %v1028 = vrcp.pop %v1027
    %v1029 = vmul.f32 %v1027, %v1028
    %v1030 = vsub.f32 1.0, %v1029
    %v1031 = vmul.f32 %v1028, %v1030
    %v1032 = vadd.f32 %v1028, %v1031
    %vm1033 = vweird.f32 %v1027
    %vm1034 = vweird.f32 %v1028
    %vm1035 = vmor %vm1033, %vm1034
    %v1036 = vsel %vm1035, %v1028, %v1032
    %v1037 = vand.u32 2147483647, %v1027
    %vm1038 = vcmp.eq.f32.partialorder %v1037, 8.507059e+37
    %v1039 = vand.u32 %v1027, 2147483648
    %v1040 = vor.u32 1.1754944e-38, %v1039
    %v1041 = vsel %vm1038, %v1040, %v1036
    %v1042 = vmul.f32 1.0, %v1041
    %1043 = vrot.lane.b32.xlu0 %v1042, 64
    %v1044 = vpop.permute.xlu0 %1043
    %v1045 = vmul.f32 %v1044, %v1021
    %v1046 = vadd.f32 %v1001, %v1045
    %v1047 = vtanh.pop %v1046
    %1048 = vrot.lane.b32.xlu0 %v1042, 96
    %v1049 = vpop.permute.xlu0 %1048
    %1050 = vrot.lane.b32.xlu0 %v1047, 64
    %v1051 = vpop.permute.xlu0 %1050
    %v1052 = vsub.f32 1.0, %v1049
    %v1053 = vmul.f32 %v1052, %v1051
    %v1054 = vmul.f32 %v1049, %v929
    %v1055 = vadd.f32 %v1053, %v1054
    %1056 = vmatpush.msra.mxu0 %v159
    %1057 = vmatpush.msra.mxu0 %v158
    %1058 = vmatpush.msra.mxu0 %v157
    %1059 = vmatpush.msra.mxu0 %v156
    %1060 = vmatpush.msra.mxu0 %v155
    %1061 = vmatpush.msra.mxu0 %v154
    %1062 = vmatpush.msra.mxu0 %v153
    %1063 = vmatpush.msra.mxu0 %v152
    %1064 = vmatpush.msra.mxu0 %v151
    %1065 = vmatpush.msra.mxu0 %v150
    %1066 = vmatpush.msra.mxu0 %v149
    %1067 = vmatpush.msra.mxu0 %v148
    %1068 = vmatpush.msra.mxu0 %v147
    %1069 = vmatpush.msra.mxu0 %v146
    %1070 = vmatpush.msra.mxu0 %v145
    %1071 = vmatpush.msra.mxu0 %v144
    %1072 = vmatmul.f32.gmra.mxu0 %v982
    %v1073 = vpop.f32.mrf.mxu0
    %v1074 = vadd.f32 %v239, %v1073
    %1075 = vdwg.mxu0
    %v1076 = vadd.f32 %v233, %v1074
    %v1077 = vxor.u32 %v1076, 2147483648
    %v1078 = vmul.f32 %v1077, 1.442695
    %v1079 = vpow.pop %v1078
    %v1080 = vadd.f32 %v1079, 1.0
    %v1081 = vrcp.pop %v1080
    %v1082 = vmul.f32 %v1080, %v1081
    %v1083 = vsub.f32 1.0, %v1082
    %v1084 = vmul.f32 %v1081, %v1083
    %v1085 = vadd.f32 %v1081, %v1084
    %vm1086 = vweird.f32 %v1080
    %vm1087 = vweird.f32 %v1081
    %vm1088 = vmor %vm1086, %vm1087
    %v1089 = vsel %vm1088, %v1081, %v1085
    %v1090 = vand.u32 2147483647, %v1080
    %vm1091 = vcmp.eq.f32.partialorder %v1090, 8.507059e+37
    %v1092 = vand.u32 %v1080, 2147483648
    %v1093 = vor.u32 1.1754944e-38, %v1092
    %v1094 = vsel %vm1091, %v1093, %v1089
    %v1095 = vmul.f32 1.0, %v1094
    %1096 = vrot.lane.b32.xlu0 %v1095, 64
    %v1097 = vpop.permute.xlu0 %1096
    %v1098 = vmul.f32 %v1097, %v1074
    %v1099 = vadd.f32 %v233, %v1098
    %v1100 = vtanh.pop %v1099
    %1101 = vrot.lane.b32.xlu0 %v1095, 96
    %v1102 = vpop.permute.xlu0 %1101
    %1103 = vrot.lane.b32.xlu0 %v1100, 64
    %v1104 = vpop.permute.xlu0 %1103
    %v1105 = vsub.f32 1.0, %v1102
    %v1106 = vmul.f32 %v1105, %v1104
    %v1107 = vmul.f32 %v1102, %v982
    %v1108 = vadd.f32 %v1106, %v1107
    %1109 = vmatpush.msra.mxu0 %v143
    %1110 = vmatpush.msra.mxu0 %v142
    %1111 = vmatpush.msra.mxu0 %v141
    %1112 = vmatpush.msra.mxu0 %v140
    %1113 = vmatpush.msra.mxu0 %v139
    %1114 = vmatpush.msra.mxu0 %v138
    %1115 = vmatpush.msra.mxu0 %v137
    %1116 = vmatpush.msra.mxu0 %v136
    %1117 = vmatpush.msra.mxu0 %v135
    %1118 = vmatpush.msra.mxu0 %v134
    %1119 = vmatpush.msra.mxu0 %v133
    %1120 = vmatpush.msra.mxu0 %v132
    %1121 = vmatpush.msra.mxu0 %v131
    %1122 = vmatpush.msra.mxu0 %v130
    %1123 = vmatpush.msra.mxu0 %v129
    %1124 = vmatpush.msra.mxu0 %v128
    %1125 = vmatmul.f32.gmra.mxu0 %v982
    %v1126 = vpop.f32.mrf.mxu0
    %v1127 = vadd.f32 %v348, %v1126
    %1128 = vdwg.mxu0
    %1129 = vmatpush.msra.mxu0 %v176
    %1130 = vmatpush.msra.mxu0 %v175
    %1131 = vmatpush.msra.mxu0 %v174
    %1132 = vmatpush.msra.mxu0 %v173
    %1133 = vmatpush.msra.mxu0 %v172
    %1134 = vmatpush.msra.mxu0 %v171
    %1135 = vmatpush.msra.mxu0 %v170
    %1136 = vmatpush.msra.mxu0 %v169
    %1137 = vmatpush.msra.mxu0 %v168
    %1138 = vmatpush.msra.mxu0 %v167
    %1139 = vmatpush.msra.mxu0 %v166
    %1140 = vmatpush.msra.mxu0 %v165
    %1141 = vmatpush.msra.mxu0 %v164
    %1142 = vmatpush.msra.mxu0 %v163
    %1143 = vmatpush.msra.mxu0 %v162
    %1144 = vmatpush.msra.mxu0 %v161
    %1145 = vmatmul.f32.gmra.mxu0 %v1055
    %v1146 = vpop.f32.mrf.mxu0
    %v1147 = vadd.f32 %v371, %v1146
    %1148 = vdwg.mxu0
    %v1149 = vadd.f32 %v1127, %v1147
    %v1150 = vxor.u32 %v1149, 2147483648
    %v1151 = vmul.f32 %v1150, 1.442695
    %v1152 = vpow.pop %v1151
    %v1153 = vadd.f32 %v1152, 1.0
    %v1154 = vrcp.pop %v1153
    %v1155 = vmul.f32 %v1153, %v1154
    %v1156 = vsub.f32 1.0, %v1155
    %v1157 = vmul.f32 %v1154, %v1156
    %v1158 = vadd.f32 %v1154, %v1157
    %vm1159 = vweird.f32 %v1153
    %vm1160 = vweird.f32 %v1154
    %vm1161 = vmor %vm1159, %vm1160
    %v1162 = vsel %vm1161, %v1154, %v1158
    %v1163 = vand.u32 2147483647, %v1153
    %vm1164 = vcmp.eq.f32.partialorder %v1163, 8.507059e+37
    %v1165 = vand.u32 %v1153, 2147483648
    %v1166 = vor.u32 1.1754944e-38, %v1165
    %v1167 = vsel %vm1164, %v1166, %v1162
    %v1168 = vmul.f32 1.0, %v1167
    %1169 = vrot.lane.b32.xlu0 %v1168, 64
    %v1170 = vpop.permute.xlu0 %1169
    %v1171 = vmul.f32 %v1170, %v1147
    %v1172 = vadd.f32 %v1127, %v1171
    %v1173 = vtanh.pop %v1172
    %1174 = vrot.lane.b32.xlu0 %v1168, 96
    %v1175 = vpop.permute.xlu0 %1174
    %1176 = vrot.lane.b32.xlu0 %v1173, 64
    %v1177 = vpop.permute.xlu0 %1176
    %v1178 = vsub.f32 1.0, %v1175
    %v1179 = vmul.f32 %v1178, %v1177
    %v1180 = vmul.f32 %v1175, %v1055
    %v1181 = vadd.f32 %v1179, %v1180
    %1182 = vmatpush.msra.mxu0 %v143
    %1183 = vmatpush.msra.mxu0 %v142
    %1184 = vmatpush.msra.mxu0 %v141
    %1185 = vmatpush.msra.mxu0 %v140
    %1186 = vmatpush.msra.mxu0 %v139
    %1187 = vmatpush.msra.mxu0 %v138
    %1188 = vmatpush.msra.mxu0 %v137
    %1189 = vmatpush.msra.mxu0 %v136
    %1190 = vmatpush.msra.mxu0 %v135
    %1191 = vmatpush.msra.mxu0 %v134
    %1192 = vmatpush.msra.mxu0 %v133
    %1193 = vmatpush.msra.mxu0 %v132
    %1194 = vmatpush.msra.mxu0 %v131
    %1195 = vmatpush.msra.mxu0 %v130
    %1196 = vmatpush.msra.mxu0 %v129
    %1197 = vmatpush.msra.mxu0 %v128
    %1198 = vmatmul.f32.gmra.mxu0 %v1108
    %v1199 = vpop.f32.mrf.mxu0
    %v1200 = vadd.f32 %v348, %v1199
    %1201 = vdwg.mxu0
    %1202 = vmatpush.msra.mxu0 %v176
    %1203 = vmatpush.msra.mxu0 %v175
    %1204 = vmatpush.msra.mxu0 %v174
    %1205 = vmatpush.msra.mxu0 %v173
    %1206 = vmatpush.msra.mxu0 %v172
    %1207 = vmatpush.msra.mxu0 %v171
    %1208 = vmatpush.msra.mxu0 %v170
    %1209 = vmatpush.msra.mxu0 %v169
    %1210 = vmatpush.msra.mxu0 %v168
    %1211 = vmatpush.msra.mxu0 %v167
    %1212 = vmatpush.msra.mxu0 %v166
    %1213 = vmatpush.msra.mxu0 %v165
    %1214 = vmatpush.msra.mxu0 %v164
    %1215 = vmatpush.msra.mxu0 %v163
    %1216 = vmatpush.msra.mxu0 %v162
    %1217 = vmatpush.msra.mxu0 %v161
    %1218 = vmatmul.f32.gmra.mxu0 %v1181
    %v1219 = vpop.f32.mrf.mxu0
    %v1220 = vadd.f32 %v371, %v1219
    %1221 = vdwg.mxu0
    %v1222 = vadd.f32 %v1200, %v1220
    %v1223 = vxor.u32 %v1222, 2147483648
    %v1224 = vmul.f32 %v1223, 1.442695
    %v1225 = vpow.pop %v1224
    %v1226 = vadd.f32 %v1225, 1.0
    %v1227 = vrcp.pop %v1226
    %v1228 = vmul.f32 %v1226, %v1227
    %v1229 = vsub.f32 1.0, %v1228
    %v1230 = vmul.f32 %v1227, %v1229
    %v1231 = vadd.f32 %v1227, %v1230
    %vm1232 = vweird.f32 %v1226
    %vm1233 = vweird.f32 %v1227
    %vm1234 = vmor %vm1232, %vm1233
    %v1235 = vsel %vm1234, %v1227, %v1231
    %v1236 = vand.u32 2147483647, %v1226
    %vm1237 = vcmp.eq.f32.partialorder %v1236, 8.507059e+37
    %v1238 = vand.u32 %v1226, 2147483648
    %v1239 = vor.u32 1.1754944e-38, %v1238
    %v1240 = vsel %vm1237, %v1239, %v1235
    %v1241 = vmul.f32 1.0, %v1240
    %1242 = vrot.lane.b32.xlu0 %v1241, 64
    %v1243 = vpop.permute.xlu0 %1242
    %v1244 = vmul.f32 %v1243, %v1220
    %v1245 = vadd.f32 %v1200, %v1244
    %v1246 = vtanh.pop %v1245
    %1247 = vrot.lane.b32.xlu0 %v1241, 96
    %v1248 = vpop.permute.xlu0 %1247
    %1249 = vrot.lane.b32.xlu0 %v1246, 64
    %v1250 = vpop.permute.xlu0 %1249
    %v1251 = vsub.f32 1.0, %v1248
    %v1252 = vmul.f32 %v1251, %v1250
    %v1253 = vmul.f32 %v1248, %v1181
    %v1254 = vadd.f32 %v1252, %v1253
    %1255 = vst [vmem:[#allocation11] sm:$0xff] %v1108
    %s1256 = scalar_lea.vmem [#allocation11], 8
    %1257 = vst [vmem:[%s1256] sm:$0xff] %v1254
    %v1258 = vld [vmem:[#allocation10] sm:$0xff]
    %v1259 = vld [vmem:[#allocation10 + $0x8] sm:$0xff]
    %v1260 = vld [vmem:[#allocation10 + $0x10] sm:$0xff]
    %v1261 = vld [vmem:[#allocation10 + $0x18] sm:$0xff]
    %v1262 = vld [vmem:[#allocation10 + $0x20] sm:$0xff]
    %v1263 = vld [vmem:[#allocation10 + $0x28] sm:$0xff]
    %v1264 = vld [vmem:[#allocation10 + $0x30] sm:$0xff]
    %v1265 = vld [vmem:[#allocation10 + $0x38] sm:$0xff]
    %v1266 = vld [vmem:[#allocation10 + $0x40] sm:$0xff]
    %v1267 = vld [vmem:[#allocation10 + $0x48] sm:$0xff]
    %v1268 = vld [vmem:[#allocation10 + $0x50] sm:$0xff]
    %v1269 = vld [vmem:[#allocation10 + $0x58] sm:$0xff]
    %v1270 = vld [vmem:[#allocation10 + $0x60] sm:$0xff]
    %v1271 = vld [vmem:[#allocation10 + $0x68] sm:$0xff]
    %v1272 = vld [vmem:[#allocation10 + $0x70] sm:$0xff]
    %v1273 = vld [vmem:[#allocation10 + $0x78] sm:$0xff]
    %v1274 = vld [vmem:[%s7] sm:$0x1]
    %v1276 = vperm.slane %v1274, 0
    %1278 = vmatpush.msra.mxu0 %v1273
    %1279 = vmatpush.msra.mxu0 %v1272
    %1280 = vmatpush.msra.mxu0 %v1271
    %1281 = vmatpush.msra.mxu0 %v1270
    %1282 = vmatpush.msra.mxu0 %v1269
    %1283 = vmatpush.msra.mxu0 %v1268
    %1284 = vmatpush.msra.mxu0 %v1267
    %1285 = vmatpush.msra.mxu0 %v1266
    %1286 = vmatpush.msra.mxu0 %v1265
    %1287 = vmatpush.msra.mxu0 %v1264
    %1288 = vmatpush.msra.mxu0 %v1263
    %1289 = vmatpush.msra.mxu0 %v1262
    %1290 = vmatpush.msra.mxu0 %v1261
    %1291 = vmatpush.msra.mxu0 %v1260
    %1292 = vmatpush.msra.mxu0 %v1259
    %1293 = vmatpush.msra.mxu0 %v1258
    %1294 = vmatmul.f32.gmra.mxu0 %v425
    %v1295 = vpop.f32.mrf.mxu0
    %v1296 = vadd.f32 %v1276, %v1295
    %1297 = vmatmul.f32.gmra.mxu0 %v551
    %v1298 = vpop.f32.mrf.mxu0
    %v1299 = vadd.f32 %v1276, %v1298
    %1300 = vmatmul.f32.gmra.mxu0 %v677
    %v1301 = vpop.f32.mrf.mxu0
    %v1302 = vadd.f32 %v1276, %v1301
    %1303 = vmatmul.f32.gmra.mxu0 %v803
    %v1304 = vpop.f32.mrf.mxu0
    %v1305 = vadd.f32 %v1276, %v1304
    %1306 = vmatmul.f32.gmra.mxu0 %v929
    %v1307 = vpop.f32.mrf.mxu0
    %v1308 = vadd.f32 %v1276, %v1307
    %1309 = vmatmul.f32.gmra.mxu0 %v1055
    %v1310 = vpop.f32.mrf.mxu0
    %v1311 = vadd.f32 %v1276, %v1310
    %1312 = vmatmul.f32.gmra.mxu0 %v1181
    %v1313 = vpop.f32.mrf.mxu0
    %v1314 = vadd.f32 %v1276, %v1313
    %1315 = vmatmul.f32.gmra.mxu0 %v1254
    %v1316 = vpop.f32.mrf.mxu0
    %v1317 = vadd.f32 %v1276, %v1316
    %1318 = vdwg.mxu0
    %v1319 = vxor.u32 %v1296, 2147483648
    %v1320 = vxor.u32 %v1299, 2147483648
    %v1321 = vxor.u32 %v1302, 2147483648
    %v1322 = vxor.u32 %v1305, 2147483648
    %v1323 = vxor.u32 %v1308, 2147483648
    %v1324 = vxor.u32 %v1311, 2147483648
    %v1325 = vxor.u32 %v1314, 2147483648
    %v1326 = vxor.u32 %v1317, 2147483648
    %v1327 = vmul.f32 %v1319, 1.442695
    %v1328 = vpow.pop %v1327
    %v1329 = vmul.f32 %v1320, 1.442695
    %v1330 = vpow.pop %v1329
    %v1331 = vmul.f32 %v1321, 1.442695
    %v1332 = vpow.pop %v1331
    %v1333 = vmul.f32 %v1322, 1.442695
    %v1334 = vpow.pop %v1333
    %v1335 = vmul.f32 %v1323, 1.442695
    %v1336 = vpow.pop %v1335
    %v1337 = vmul.f32 %v1324, 1.442695
    %v1338 = vpow.pop %v1337
    %v1339 = vmul.f32 %v1325, 1.442695
    %v1340 = vpow.pop %v1339
    %v1341 = vmul.f32 %v1326, 1.442695
    %v1342 = vpow.pop %v1341
    %v1343 = vadd.f32 %v1328, 1.0
    %v1344 = vadd.f32 %v1330, 1.0
    %v1345 = vadd.f32 %v1332, 1.0
    %v1346 = vadd.f32 %v1334, 1.0
    %v1347 = vadd.f32 %v1336, 1.0
    %v1348 = vadd.f32 %v1338, 1.0
    %v1349 = vadd.f32 %v1340, 1.0
    %v1350 = vadd.f32 %v1342, 1.0
    %v1351 = vrcp.pop %v1343
    %v1352 = vmul.f32 %v1343, %v1351
    %v1353 = vsub.f32 1.0, %v1352
    %v1354 = vmul.f32 %v1351, %v1353
    %v1355 = vadd.f32 %v1351, %v1354
    %vm1356 = vweird.f32 %v1343
    %vm1357 = vweird.f32 %v1351
    %vm1358 = vmor %vm1356, %vm1357
    %v1359 = vsel %vm1358, %v1351, %v1355
    %v1360 = vand.u32 2147483647, %v1343
    %vm1361 = vcmp.eq.f32.partialorder %v1360, 8.507059e+37
    %v1362 = vand.u32 %v1343, 2147483648
    %v1363 = vor.u32 1.1754944e-38, %v1362
    %v1364 = vsel %vm1361, %v1363, %v1359
    %v1365 = vmul.f32 1.0, %v1364
    %v1366 = vrcp.pop %v1344
    %v1367 = vmul.f32 %v1344, %v1366
    %v1368 = vsub.f32 1.0, %v1367
    %v1369 = vmul.f32 %v1366, %v1368
    %v1370 = vadd.f32 %v1366, %v1369
    %vm1371 = vweird.f32 %v1344
    %vm1372 = vweird.f32 %v1366
    %vm1373 = vmor %vm1371, %vm1372
    %v1374 = vsel %vm1373, %v1366, %v1370
    %v1375 = vand.u32 2147483647, %v1344
    %vm1376 = vcmp.eq.f32.partialorder %v1375, 8.507059e+37
    %v1377 = vand.u32 %v1344, 2147483648
    %v1378 = vor.u32 1.1754944e-38, %v1377
    %v1379 = vsel %vm1376, %v1378, %v1374
    %v1380 = vmul.f32 1.0, %v1379
    %v1381 = vrcp.pop %v1345
    %v1382 = vmul.f32 %v1345, %v1381
    %v1383 = vsub.f32 1.0, %v1382
    %v1384 = vmul.f32 %v1381, %v1383
    %v1385 = vadd.f32 %v1381, %v1384
    %vm1386 = vweird.f32 %v1345
    %vm1387 = vweird.f32 %v1381
    %vm1388 = vmor %vm1386, %vm1387
    %v1389 = vsel %vm1388, %v1381, %v1385
    %v1390 = vand.u32 2147483647, %v1345
    %vm1391 = vcmp.eq.f32.partialorder %v1390, 8.507059e+37
    %v1392 = vand.u32 %v1345, 2147483648
    %v1393 = vor.u32 1.1754944e-38, %v1392
    %v1394 = vsel %vm1391, %v1393, %v1389
    %v1395 = vmul.f32 1.0, %v1394
    %v1396 = vrcp.pop %v1346
    %v1397 = vmul.f32 %v1346, %v1396
    %v1398 = vsub.f32 1.0, %v1397
    %v1399 = vmul.f32 %v1396, %v1398
    %v1400 = vadd.f32 %v1396, %v1399
    %vm1401 = vweird.f32 %v1346
    %vm1402 = vweird.f32 %v1396
    %vm1403 = vmor %vm1401, %vm1402
    %v1404 = vsel %vm1403, %v1396, %v1400
    %v1405 = vand.u32 2147483647, %v1346
    %vm1406 = vcmp.eq.f32.partialorder %v1405, 8.507059e+37
    %v1407 = vand.u32 %v1346, 2147483648
    %v1408 = vor.u32 1.1754944e-38, %v1407
    %v1409 = vsel %vm1406, %v1408, %v1404
    %v1410 = vmul.f32 1.0, %v1409
    %v1411 = vrcp.pop %v1347
    %v1412 = vmul.f32 %v1347, %v1411
    %v1413 = vsub.f32 1.0, %v1412
    %v1414 = vmul.f32 %v1411, %v1413
    %v1415 = vadd.f32 %v1411, %v1414
    %vm1416 = vweird.f32 %v1347
    %vm1417 = vweird.f32 %v1411
    %vm1418 = vmor %vm1416, %vm1417
    %v1419 = vsel %vm1418, %v1411, %v1415
    %v1420 = vand.u32 2147483647, %v1347
    %vm1421 = vcmp.eq.f32.partialorder %v1420, 8.507059e+37
    %v1422 = vand.u32 %v1347, 2147483648
    %v1423 = vor.u32 1.1754944e-38, %v1422
    %v1424 = vsel %vm1421, %v1423, %v1419
    %v1425 = vmul.f32 1.0, %v1424
    %v1426 = vrcp.pop %v1348
    %v1427 = vmul.f32 %v1348, %v1426
    %v1428 = vsub.f32 1.0, %v1427
    %v1429 = vmul.f32 %v1426, %v1428
    %v1430 = vadd.f32 %v1426, %v1429
    %vm1431 = vweird.f32 %v1348
    %vm1432 = vweird.f32 %v1426
    %vm1433 = vmor %vm1431, %vm1432
    %v1434 = vsel %vm1433, %v1426, %v1430
    %v1435 = vand.u32 2147483647, %v1348
    %vm1436 = vcmp.eq.f32.partialorder %v1435, 8.507059e+37
    %v1437 = vand.u32 %v1348, 2147483648
    %v1438 = vor.u32 1.1754944e-38, %v1437
    %v1439 = vsel %vm1436, %v1438, %v1434
    %v1440 = vmul.f32 1.0, %v1439
    %v1441 = vrcp.pop %v1349
    %v1442 = vmul.f32 %v1349, %v1441
    %v1443 = vsub.f32 1.0, %v1442
    %v1444 = vmul.f32 %v1441, %v1443
    %v1445 = vadd.f32 %v1441, %v1444
    %vm1446 = vweird.f32 %v1349
    %vm1447 = vweird.f32 %v1441
    %vm1448 = vmor %vm1446, %vm1447
    %v1449 = vsel %vm1448, %v1441, %v1445
    %v1450 = vand.u32 2147483647, %v1349
    %vm1451 = vcmp.eq.f32.partialorder %v1450, 8.507059e+37
    %v1452 = vand.u32 %v1349, 2147483648
    %v1453 = vor.u32 1.1754944e-38, %v1452
    %v1454 = vsel %vm1451, %v1453, %v1449
    %v1455 = vmul.f32 1.0, %v1454
    %v1456 = vrcp.pop %v1350
    %v1457 = vmul.f32 %v1350, %v1456
    %v1458 = vsub.f32 1.0, %v1457
    %v1459 = vmul.f32 %v1456, %v1458
    %v1460 = vadd.f32 %v1456, %v1459
    %vm1461 = vweird.f32 %v1350
    %vm1462 = vweird.f32 %v1456
    %vm1463 = vmor %vm1461, %vm1462
    %v1464 = vsel %vm1463, %v1456, %v1460
    %v1465 = vand.u32 2147483647, %v1350
    %vm1466 = vcmp.eq.f32.partialorder %v1465, 8.507059e+37
    %v1467 = vand.u32 %v1350, 2147483648
    %v1468 = vor.u32 1.1754944e-38, %v1467
    %v1469 = vsel %vm1466, %v1468, %v1464
    %v1470 = vmul.f32 1.0, %v1469
    %vm1471 = vcmp.gt.f32.partialorder %v1365, 0.5
    %vm1472 = vcmp.gt.f32.partialorder %v1380, 0.5
    %vm1473 = vcmp.gt.f32.partialorder %v1395, 0.5
    %vm1474 = vcmp.gt.f32.partialorder %v1410, 0.5
    %vm1475 = vcmp.gt.f32.partialorder %v1425, 0.5
    %vm1476 = vcmp.gt.f32.partialorder %v1440, 0.5
    %vm1477 = vcmp.gt.f32.partialorder %v1455, 0.5
    %vm1478 = vcmp.gt.f32.partialorder %v1470, 0.5
    %v1479 = vsel %vm1471, 1, 0
    %v1480 = vsel %vm1472, 1, 0
    %v1481 = vsel %vm1473, 1, 0
    %v1482 = vsel %vm1474, 1, 0
    %v1483 = vsel %vm1475, 1, 0
    %v1484 = vsel %vm1476, 1, 0
    %v1485 = vsel %vm1477, 1, 0
    %v1486 = vsel %vm1478, 1, 0
    %v1487 = vcvt.s32.f32 %v1479
    %v1488 = vcvt.s32.f32 %v1480
    %v1489 = vcvt.s32.f32 %v1481
    %v1490 = vcvt.s32.f32 %v1482
    %v1491 = vcvt.s32.f32 %v1483
    %v1492 = vcvt.s32.f32 %v1484
    %v1493 = vcvt.s32.f32 %v1485
    %v1494 = vcvt.s32.f32 %v1486
    %1495 = vrot.lane.b32.xlu0 %v1487, 1
    %v1496 = vpop.permute.xlu0 %1495
    %1497 = vrot.lane.b32.xlu0 %v1488, 1
    %v1498 = vpop.permute.xlu0 %1497
    %1499 = vrot.lane.b32.xlu0 %v1489, 1
    %v1500 = vpop.permute.xlu0 %1499
    %1501 = vrot.lane.b32.xlu0 %v1490, 1
    %v1502 = vpop.permute.xlu0 %1501
    %1503 = vrot.lane.b32.xlu0 %v1491, 1
    %v1504 = vpop.permute.xlu0 %1503
    %1505 = vrot.lane.b32.xlu0 %v1492, 1
    %v1506 = vpop.permute.xlu0 %1505
    %1507 = vrot.lane.b32.xlu0 %v1493, 1
    %v1508 = vpop.permute.xlu0 %1507
    %1509 = vrot.lane.b32.xlu0 %v1494, 1
    %v1510 = vpop.permute.xlu0 %1509
    %v1511 = vlaneseq
    %v1512 = vand.u32 %v1511, 127
    %vm1513 = vcmp.eq.s32.totalorder %v1512, 1
    %v1514 = vmul.f32 %v1296, %v1496
    %v1515 = vmul.f32 %v1299, %v1498
    %v1516 = vmul.f32 %v1302, %v1500
    %v1517 = vmul.f32 %v1305, %v1502
    %v1518 = vmul.f32 %v1308, %v1504
    %v1519 = vmul.f32 %v1311, %v1506
    %v1520 = vmul.f32 %v1314, %v1508
    %v1521 = vmul.f32 %v1317, %v1510
    %v1522 = vsel %vm1513, %v1514, %v1296
    %v1523 = vsel %vm1513, %v1515, %v1299
    %v1524 = vsel %vm1513, %v1516, %v1302
    %v1525 = vsel %vm1513, %v1517, %v1305
    %v1526 = vsel %vm1513, %v1518, %v1308
    %v1527 = vsel %vm1513, %v1519, %v1311
    %v1528 = vsel %vm1513, %v1520, %v1314
    %v1529 = vsel %vm1513, %v1521, %v1317
    %1530 = vst [vmem:[#allocation12] sm:$0xff] %v1522
    %1531 = vst [vmem:[#allocation12 + $0x8] sm:$0xff] %v1523
    %1532 = vst [vmem:[#allocation12 + $0x10] sm:$0xff] %v1524
    %1533 = vst [vmem:[#allocation12 + $0x18] sm:$0xff] %v1525
    %1534 = vst [vmem:[#allocation12 + $0x20] sm:$0xff] %v1526
    %1535 = vst [vmem:[#allocation12 + $0x28] sm:$0xff] %v1527
    %1536 = vst [vmem:[#allocation12 + $0x30] sm:$0xff] %v1528
    %1537 = vst [vmem:[#allocation12 + $0x38] sm:$0xff] %v1529
    // Predicated region
    $region54: #{tpu_custom_call.1} parent=1 // pred_check
      _
    $region55: #{tpu_custom_call.1} parent=1 // pred_check_branch
      %1539 = sbr.rel (0) target = $region57
    $region56: #{tpu_custom_call.1} parent=1 // pred_region
      %1541 = vsyncadd [#allocation4], 0
      %s1542 = sshll.u32 [#allocation11], 4
      %s1543 = int_to_ptr.vmem [resolvable:$true] %s1542
      %s1544 = sshll.u32 %s8, 4
      %s1545 = int_to_ptr.hbm [resolvable:$true] %s1544
      %1550 = dma.vmem_to_hbm [thread:$0]  %s1543, 256, %s1545, [#allocation4], 128, 128, 8
    $region57: #{tpu_custom_call.1} parent=1 // pred_fallthru
      _
    // Predicated region
    $region58: #{tpu_custom_call.1} parent=1 // pred_check
      _
    $region59: #{tpu_custom_call.1} parent=1 // pred_check_branch
      %1552 = sbr.rel (0) target = $region61
    $region60: #{tpu_custom_call.1} parent=1 // pred_region
      %1554 = vsyncadd [#allocation13], 0
      %s1555 = sshll.u32 [#allocation12], 4
      %s1556 = int_to_ptr.vmem [resolvable:$true] %s1555
      %s1557 = sshll.u32 %s9, 4
      %s1558 = int_to_ptr.hbm [resolvable:$true] %s1557
      %1563 = dma.vmem_to_hbm [thread:$0]  %s1556, 1024, %s1558, [#allocation13], 128, 128, 8
    $region61: #{tpu_custom_call.1} parent=1 // pred_fallthru
      _
    // Predicated region
    $region62: #{tpu_custom_call.1} parent=1 // pred_check
      _
    $region63: #{tpu_custom_call.1} parent=1 // pred_check_branch
      %1565 = sbr.rel (0) target = $region65
    $region64: #{tpu_custom_call.1} parent=1 // pred_region
      %1567 = dma.done [#allocation4], 256
    $region65: #{tpu_custom_call.1} parent=1 // pred_fallthru
      _
    // Predicated region
    $region66: #{tpu_custom_call.1} parent=1 // pred_check
      _
    $region67: #{tpu_custom_call.1} parent=1 // pred_check_branch
      %1569 = sbr.rel (0) target = $region69
    $region68: #{tpu_custom_call.1} parent=1 // pred_region
      %1571 = dma.done [#allocation13], 1024
    $region69: #{tpu_custom_call.1} parent=1 // pred_fallthru
      _
    %1572 = vsyncpa [#allocation3], 1
    %1573 = vsyncpa [#allocation6], 1
    %1574 = vsyncpa [#allocation9], 1
    %1575 = vsyncpa [#allocation4], 1
    %1576 = vsyncpa [#allocation13], 1

</llo_original>
